<compile_context>
chip_gen: v7x
topology: tpu7x:2x2x1
jax: 0.10.0
libtpu: 0.0.40
codegen_flags: <defaults>
</compile_context>

<pallas_src>
import math

import jax
import jax.numpy as jnp
from jax.experimental import pallas as pl
from jax.experimental.pallas import tpu as pltpu

# ---- sizes (small, consistent with the module's forward) -------------------
B = 2          # batch
L = 8          # sequence length
M = B * L      # flattened rows
H = 32         # hidden_size (768 in the real model)
F = 4 * H      # FFN intermediate
V = 64         # synthetic vocab
C = 6          # num_classes
CP = 128       # classifier output padded to one full lane width (unmasked stores)


def _layernorm(h, g, b):
    mu = jnp.mean(h, axis=-1, keepdims=True)
    var = jnp.mean((h - mu) ** 2, axis=-1, keepdims=True)
    return (h - mu) * jax.lax.rsqrt(var + 1e-12) * g + b


def _gelu(x):
    # TODO(synk): HF/KoBERT BERT uses exact erf GELU; tanh approximation used here.
    return 0.5 * x * (1.0 + jnp.tanh(0.7978845608028654 * (x + 0.044715 * x * x * x)))


# ---------------------------------------------------------------------------
# Fused kernel: mask gen + embeddings + encoder layer + pooler + classifier
# ---------------------------------------------------------------------------
def bert_classifier_kernel(
        tok_ref, seg_ref, vl_ref,
        wemb_ref, semb_ref, pemb_ref,
        ln0_g_ref, ln0_b_ref,
        wq_ref, wk_ref, wv_ref, wo_ref,
        ln1_g_ref, ln1_b_ref,
        w1_ref, b1_ref, w2_ref, b2_ref,
        ln2_g_ref, ln2_b_ref,
        wp_ref, bp_ref, wc_ref, bc_ref,
        out_ref):
    # --- gen_attention_mask: additive key bias from SMEM valid_length ------
    # mask[b, :valid_length[b]] = 1 else 0  ->  bias 0 for valid keys, -1e9 else.
    # TODO(synk): valid_length == 0 would give uniform attention over padding;
    #             KoBERT always has >= 1 valid token (CLS), so not handled here.
    col = jax.lax.broadcasted_iota(jnp.int32, (B, 1, L), 2)
    row = jax.lax.broadcasted_iota(jnp.int32, (B, 1, L), 0)
    vl_b = jnp.full((B, 1, L), vl_ref[0], jnp.int32)
    for b in range(1, B):
        vl_b = jnp.where(row == b, vl_ref[b], vl_b)
    key_bias = jnp.where(col < vl_b, 0.0, -1e9).astype(jnp.float32)     # (B,1,L)

    # --- embeddings ----------------------------------------------------------
    # word: 2-D one-hot matmul (M,V)x(V,H).  TODO(synk): DMA gather at real vocab.
    tok = tok_ref[...].reshape(M, 1)                                    # (M,1) int32
    vocab_iota = jax.lax.broadcasted_iota(jnp.int32, (M, V), 1)
    tok_oh = (vocab_iota == tok).astype(jnp.float32)                    # (M,V)
    word = jnp.dot(tok_oh, wemb_ref[...],
                   preferred_element_type=jnp.float32)                  # (M,H)

    # segment: VPU select instead of a K=2 matmul.
    seg = seg_ref[...].reshape(M, 1)                                    # (M,1) int32
    segv = jnp.where(seg == 0, semb_ref[0:1, :], semb_ref[1:2, :])      # (M,H)

    # position: broadcast (L,H) over batch, then flatten to (M,H).
    x3 = (word + segv).reshape(B, L, H) + pemb_ref[...]                 # (B,L,H)
    xm = _layernorm(x3.reshape(M, H), ln0_g_ref[...], ln0_b_ref[...])   # (M,H)

    # --- single-head self attention (1/sqrt(H) pre-folded into wq) ---------
    q = jnp.dot(xm, wq_ref[...], preferred_element_type=jnp.float32)    # (M,H)
    k = jnp.dot(xm, wk_ref[...], preferred_element_type=jnp.float32)
    v = jnp.dot(xm, wv_ref[...], preferred_element_type=jnp.float32)

    q3 = q.reshape(B, L, H)
    k3 = k.reshape(B, L, H)
    v3 = v.reshape(B, L, H)
    scores = jnp.einsum('bqd,bkd->bqk', q3, k3,
                        preferred_element_type=jnp.float32)             # (B,L,L)
    scores = scores + key_bias                                          # broadcast over q
    scores = scores - jnp.max(scores, axis=-1, keepdims=True)
    e = jnp.exp(scores)
    p = e * pl.reciprocal(jnp.sum(e, axis=-1, keepdims=True), approx=True)
    ctx = jnp.einsum('bqk,bkd->bqd', p, v3,
                     preferred_element_type=jnp.float32)                # (B,L,H)
    attn = jnp.dot(ctx.reshape(M, H), wo_ref[...],
                   preferred_element_type=jnp.float32)                  # (M,H)

    h1 = _layernorm(xm + attn, ln1_g_ref[...], ln1_b_ref[...])          # (M,H)

    # --- feed-forward --------------------------------------------------------
    ff = jnp.dot(h1, w1_ref[...], preferred_element_type=jnp.float32) + b1_ref[...]
    ff = _gelu(ff)
    ff = jnp.dot(ff, w2_ref[...], preferred_element_type=jnp.float32) + b2_ref[...]

    h2 = _layernorm(h1 + ff, ln2_g_ref[...], ln2_b_ref[...])            # (M,H)

    # --- pooler (tanh(Linear(CLS))) + dropout(eval)==identity + classifier --
    cls = h2.reshape(B, L, H)[:, 0, :]                                  # (B,H)
    pooled = jnp.tanh(
        jnp.dot(cls, wp_ref[...], preferred_element_type=jnp.float32) + bp_ref[...])
    out_ref[...] = (
        jnp.dot(pooled, wc_ref[...], preferred_element_type=jnp.float32) + bc_ref[...])


# ---------------------------------------------------------------------------
# Full BERTClassifier.forward (one pallas_call)
# ---------------------------------------------------------------------------
def bert_classifier_forward(params, token_ids, valid_length, segment_ids):
    def full(shape):
        return pl.BlockSpec(shape, lambda i, _n=len(shape): (0,) * _n)

    smem_spec = pl.BlockSpec(memory_space=pltpu.MemorySpace.SMEM)

    logits_pad = pl.pallas_call(
        bert_classifier_kernel,
        out_shape=jax.ShapeDtypeStruct((B, CP), jnp.float32),
        grid=(1,),
        in_specs=[
            full((B, L, 1)), full((B, L, 1)), smem_spec,
            full((V, H)), full((2, H)), full((L, H)),
            full((1, H)), full((1, H)),
            full((H, H)), full((H, H)), full((H, H)), full((H, H)),
            full((1, H)), full((1, H)),
            full((H, F)), full((1, F)), full((F, H)), full((1, H)),
            full((1, H)), full((1, H)),
            full((H, H)), full((1, H)), full((H, CP)), full((1, CP)),
        ],
        out_specs=full((B, CP)),
        compiler_params=pltpu.CompilerParams(
            dimension_semantics=("arbitrary",)),
    )(token_ids.reshape(B, L, 1).astype(jnp.int32),
      segment_ids.reshape(B, L, 1).astype(jnp.int32),
      valid_length.reshape(B).astype(jnp.int32),
      params["word_emb"], params["seg_emb"], params["pos_emb"],
      params["ln0_g"], params["ln0_b"],
      params["wq"], params["wk"], params["wv"], params["wo"],
      params["ln1_g"], params["ln1_b"],
      params["w1"], params["b1"], params["w2"], params["b2"],
      params["ln2_g"], params["ln2_b"],
      params["wp"], params["bp"], params["wc_pad"], params["bc_pad"])

    return logits_pad[:, :C]


def init_params(key):
    ks = jax.random.split(key, 16)
    s = 0.02
    p = {
        "word_emb": s * jax.random.normal(ks[0], (V, H), jnp.float32),
        "seg_emb":  s * jax.random.normal(ks[1], (2, H), jnp.float32),
        "pos_emb":  s * jax.random.normal(ks[2], (L, H), jnp.float32),
        "ln0_g": jnp.ones((1, H), jnp.float32),   # embedding LayerNorm
        "ln0_b": jnp.zeros((1, H), jnp.float32),
        "wq": s * jax.random.normal(ks[3], (H, H), jnp.float32),
        "wk": s * jax.random.normal(ks[4], (H, H), jnp.float32),
        "wv": s * jax.random.normal(ks[5], (H, H), jnp.float32),
        "wo": s * jax.random.normal(ks[6], (H, H), jnp.float32),
        "ln1_g": jnp.ones((1, H), jnp.float32),
        "ln1_b": jnp.zeros((1, H), jnp.float32),
        "w1": s * jax.random.normal(ks[7], (H, F), jnp.float32),
        "b1": jnp.zeros((1, F), jnp.float32),
        "w2": s * jax.random.normal(ks[8], (F, H), jnp.float32),
        "b2": jnp.zeros((1, H), jnp.float32),
        "ln2_g": jnp.ones((1, H), jnp.float32),
        "ln2_b": jnp.zeros((1, H), jnp.float32),
        "wp": s * jax.random.normal(ks[9], (H, H), jnp.float32),   # pooler dense
        "bp": jnp.zeros((1, H), jnp.float32),
    }
    wc = s * jax.random.normal(ks[10], (H, C), jnp.float32)        # classifier Linear
    bc = jnp.zeros((1, C), jnp.float32)
    # --- pre-baked (checkpoint-load-time) transforms: never re-run per call ----
    p["wq"] = p["wq"] * jnp.float32(1.0 / math.sqrt(H))            # fold 1/sqrt(H)
    p["wc_pad"] = jnp.zeros((H, CP), jnp.float32).at[:, :C].set(wc)
    p["bc_pad"] = jnp.zeros((1, CP), jnp.float32).at[:, :C].set(bc)
    return p


if __name__ == "__main__":
    key = jax.random.PRNGKey(0)
    k_param, k_tok = jax.random.split(key)

    params = init_params(k_param)
    token_ids = jax.random.randint(k_tok, (B, L), 0, V, dtype=jnp.int32)
    valid_length = jnp.array([5, 8], dtype=jnp.int32)
    segment_ids = jnp.zeros((B, L), dtype=jnp.int32)

    fwd = jax.jit(bert_classifier_forward)
    logits = fwd(params, token_ids, valid_length, segment_ids)
    jax.block_until_ready(logits)
    assert logits.shape == (B, C) and logits.dtype == jnp.float32
    print("KERNEL_OK")
</pallas_src>

<mosaic_0001>
module attributes {stable_mosaic.version = 11 : i64} {
  func.func @bert_classifier_kernel(%arg0: i32, %arg1: memref<2x8x1xi32, #tpu.memory_space<vmem>>, %arg2: memref<2x8x1xi32, #tpu.memory_space<vmem>>, %arg3: memref<2xi32, #tpu.memory_space<smem>>, %arg4: memref<64x32xf32, #tpu.memory_space<vmem>>, %arg5: memref<2x32xf32, #tpu.memory_space<vmem>>, %arg6: memref<8x32xf32, #tpu.memory_space<vmem>>, %arg7: memref<1x32xf32, #tpu.memory_space<vmem>>, %arg8: memref<1x32xf32, #tpu.memory_space<vmem>>, %arg9: memref<32x32xf32, #tpu.memory_space<vmem>>, %arg10: memref<32x32xf32, #tpu.memory_space<vmem>>, %arg11: memref<32x32xf32, #tpu.memory_space<vmem>>, %arg12: memref<32x32xf32, #tpu.memory_space<vmem>>, %arg13: memref<1x32xf32, #tpu.memory_space<vmem>>, %arg14: memref<1x32xf32, #tpu.memory_space<vmem>>, %arg15: memref<32x128xf32, #tpu.memory_space<vmem>>, %arg16: memref<1x128xf32, #tpu.memory_space<vmem>>, %arg17: memref<128x32xf32, #tpu.memory_space<vmem>>, %arg18: memref<1x32xf32, #tpu.memory_space<vmem>>, %arg19: memref<1x32xf32, #tpu.memory_space<vmem>>, %arg20: memref<1x32xf32, #tpu.memory_space<vmem>>, %arg21: memref<32x32xf32, #tpu.memory_space<vmem>>, %arg22: memref<1x32xf32, #tpu.memory_space<vmem>>, %arg23: memref<32x128xf32, #tpu.memory_space<vmem>>, %arg24: memref<1x128xf32, #tpu.memory_space<vmem>>, %arg25: memref<2x128xf32, #tpu.memory_space<vmem>>) attributes {dimension_semantics = [#tpu.dimension_semantics<arbitrary>], iteration_bounds = array<i64: 1>, scalar_prefetch = 0 : i64, scratch_operands = 0 : i64, tpu.core_type = #tpu.core_type<tc>, window_params = [{pipeline_mode = #tpu.pipeline_mode<synchronous>, transform_indices = @transform_0, window_bounds = array<i64: 2, 8, 1>}, {pipeline_mode = #tpu.pipeline_mode<synchronous>, transform_indices = @transform_1, window_bounds = array<i64: 2, 8, 1>}, {transform_indices = @transform_2, window_bounds = array<i64: 2>}, {pipeline_mode = #tpu.pipeline_mode<synchronous>, transform_indices = @transform_3, window_bounds = array<i64: 64, 32>}, {pipeline_mode = #tpu.pipeline_mode<synchronous>, transform_indices = @transform_4, window_bounds = array<i64: 2, 32>}, {pipeline_mode = #tpu.pipeline_mode<synchronous>, transform_indices = @transform_5, window_bounds = array<i64: 8, 32>}, {pipeline_mode = #tpu.pipeline_mode<synchronous>, transform_indices = @transform_6, window_bounds = array<i64: 1, 32>}, {pipeline_mode = #tpu.pipeline_mode<synchronous>, transform_indices = @transform_7, window_bounds = array<i64: 1, 32>}, {pipeline_mode = #tpu.pipeline_mode<synchronous>, transform_indices = @transform_8, window_bounds = array<i64: 32, 32>}, {pipeline_mode = #tpu.pipeline_mode<synchronous>, transform_indices = @transform_9, window_bounds = array<i64: 32, 32>}, {pipeline_mode = #tpu.pipeline_mode<synchronous>, transform_indices = @transform_10, window_bounds = array<i64: 32, 32>}, {pipeline_mode = #tpu.pipeline_mode<synchronous>, transform_indices = @transform_11, window_bounds = array<i64: 32, 32>}, {pipeline_mode = #tpu.pipeline_mode<synchronous>, transform_indices = @transform_12, window_bounds = array<i64: 1, 32>}, {pipeline_mode = #tpu.pipeline_mode<synchronous>, transform_indices = @transform_13, window_bounds = array<i64: 1, 32>}, {pipeline_mode = #tpu.pipeline_mode<synchronous>, transform_indices = @transform_14, window_bounds = array<i64: 32, 128>}, {pipeline_mode = #tpu.pipeline_mode<synchronous>, transform_indices = @transform_15, window_bounds = array<i64: 1, 128>}, {pipeline_mode = #tpu.pipeline_mode<synchronous>, transform_indices = @transform_16, window_bounds = array<i64: 128, 32>}, {pipeline_mode = #tpu.pipeline_mode<synchronous>, transform_indices = @transform_17, window_bounds = array<i64: 1, 32>}, {pipeline_mode = #tpu.pipeline_mode<synchronous>, transform_indices = @transform_18, window_bounds = array<i64: 1, 32>}, {pipeline_mode = #tpu.pipeline_mode<synchronous>, transform_indices = @transform_19, window_bounds = array<i64: 1, 32>}, {pipeline_mode = #tpu.pipeline_mode<synchronous>, transform_indices = @transform_20, window_bounds = array<i64: 32, 32>}, {pipeline_mode = #tpu.pipeline_mode<synchronous>, transform_indices = @transform_21, window_bounds = array<i64: 1, 32>}, {pipeline_mode = #tpu.pipeline_mode<synchronous>, transform_indices = @transform_22, window_bounds = array<i64: 32, 128>}, {pipeline_mode = #tpu.pipeline_mode<synchronous>, transform_indices = @transform_23, window_bounds = array<i64: 1, 128>}, {pipeline_mode = #tpu.pipeline_mode<synchronous>, transform_indices = @transform_24, window_bounds = array<i64: 2, 128>}]} {
    %0 = tpu.iota {dimensions = array<i32: 2>} : vector<2x1x8xi32>
    %1 = tpu.iota {dimensions = array<i32: 0>} : vector<2x1x8xi32>
    %c0 = arith.constant 0 : index
    %2 = memref.load %arg3[%c0] : memref<2xi32, #tpu.memory_space<smem>>
    %3 = vector.broadcast %2 : i32 to vector<2x1x8xi32>
    %c1_i32 = arith.constant 1 : i32
    %4 = vector.broadcast %c1_i32 : i32 to vector<2x1x8xi32>
    %5 = arith.cmpi eq, %1, %4 : vector<2x1x8xi32>
    %c1 = arith.constant 1 : index
    %6 = memref.load %arg3[%c1] : memref<2xi32, #tpu.memory_space<smem>>
    %7 = vector.broadcast %6 : i32 to vector<2x1x8xi32>
    %8 = arith.select %5, %7, %3 : vector<2x1x8xi1>, vector<2x1x8xi32>
    %9 = arith.cmpi slt, %0, %8 : vector<2x1x8xi32>
    %cst = arith.constant 0.000000e+00 : f32
    %cst_0 = arith.constant -1.000000e+09 : f32
    %10 = vector.broadcast %cst : f32 to vector<2x1x8xf32>
    %11 = vector.broadcast %cst_0 : f32 to vector<2x1x8xf32>
    %12 = arith.select %9, %10, %11 : vector<2x1x8xi1>, vector<2x1x8xf32>
    %c0_1 = arith.constant 0 : index
    %c0_2 = arith.constant 0 : index
    %c0_3 = arith.constant 0 : index
    %13 = vector.load %arg1[%c0_1, %c0_2, %c0_3] : memref<2x8x1xi32, #tpu.memory_space<vmem>>, vector<2x8x1xi32>
    %14 = vector.shape_cast %13 : vector<2x8x1xi32> to vector<16x1xi32>
    %15 = tpu.iota {dimensions = array<i32: 1>} : vector<16x64xi32>
    %16 = vector.broadcast %14 : vector<16x1xi32> to vector<16x64xi32>
    %17 = arith.cmpi eq, %15, %16 : vector<16x64xi32>
    %18 = arith.extui %17 : vector<16x64xi1> to vector<16x64xi32>
    %19 = arith.sitofp %18 : vector<16x64xi32> to vector<16x64xf32>
    %c0_4 = arith.constant 0 : index
    %c0_5 = arith.constant 0 : index
    %20 = vector.load %arg4[%c0_4, %c0_5] : memref<64x32xf32, #tpu.memory_space<vmem>>, vector<64x32xf32>
    %cst_6 = arith.constant dense<0.000000e+00> : vector<16x32xf32>
    %21 = tpu.matmul %19, %20, %cst_6 {dimension_numbers = #tpu.dot_dimension_numbers<[1], [0], [0], [1], [0, 0, 1, 1], [], []>} : vector<16x64xf32>, vector<64x32xf32>, vector<16x32xf32> -> vector<16x32xf32>
    %c0_7 = arith.constant 0 : index
    %c0_8 = arith.constant 0 : index
    %c0_9 = arith.constant 0 : index
    %22 = vector.load %arg2[%c0_7, %c0_8, %c0_9] : memref<2x8x1xi32, #tpu.memory_space<vmem>>, vector<2x8x1xi32>
    %23 = vector.shape_cast %22 : vector<2x8x1xi32> to vector<16x1xi32>
    %c0_i32 = arith.constant 0 : i32
    %24 = vector.broadcast %c0_i32 : i32 to vector<16x1xi32>
    %25 = arith.cmpi eq, %23, %24 : vector<16x1xi32>
    %c0_10 = arith.constant 0 : index
    %c0_11 = arith.constant 0 : index
    %26 = vector.load %arg5[%c0_10, %c0_11] : memref<2x32xf32, #tpu.memory_space<vmem>>, vector<1x32xf32>
    %c1_12 = arith.constant 1 : index
    %c0_13 = arith.constant 0 : index
    %27 = vector.load %arg5[%c1_12, %c0_13] : memref<2x32xf32, #tpu.memory_space<vmem>>, vector<1x32xf32>
    %28 = vector.shape_cast %25 : vector<16x1xi1> to vector<16x1xi1>
    %29 = vector.broadcast %28 : vector<16x1xi1> to vector<16x32xi1>
    %30 = vector.shape_cast %26 : vector<1x32xf32> to vector<1x32xf32>
    %31 = vector.broadcast %30 : vector<1x32xf32> to vector<16x32xf32>
    %32 = vector.shape_cast %27 : vector<1x32xf32> to vector<1x32xf32>
    %33 = vector.broadcast %32 : vector<1x32xf32> to vector<16x32xf32>
    %34 = arith.select %29, %31, %33 : vector<16x32xi1>, vector<16x32xf32>
    %35 = arith.addf %21, %34 : vector<16x32xf32>
    %36 = vector.shape_cast %35 : vector<16x32xf32> to vector<2x8x32xf32>
    %c0_14 = arith.constant 0 : index
    %c0_15 = arith.constant 0 : index
    %37 = vector.load %arg6[%c0_14, %c0_15] : memref<8x32xf32, #tpu.memory_space<vmem>>, vector<8x32xf32>
    %38 = vector.shape_cast %37 : vector<8x32xf32> to vector<1x8x32xf32>
    %39 = vector.broadcast %38 : vector<1x8x32xf32> to vector<2x8x32xf32>
    %40 = arith.addf %36, %39 : vector<2x8x32xf32>
    %41 = vector.shape_cast %40 : vector<2x8x32xf32> to vector<16x32xf32>
    %c0_16 = arith.constant 0 : index
    %c0_17 = arith.constant 0 : index
    %42 = vector.load %arg7[%c0_16, %c0_17] : memref<1x32xf32, #tpu.memory_space<vmem>>, vector<1x32xf32>
    %c0_18 = arith.constant 0 : index
    %c0_19 = arith.constant 0 : index
    %43 = vector.load %arg8[%c0_18, %c0_19] : memref<1x32xf32, #tpu.memory_space<vmem>>, vector<1x32xf32>
    %cst_20 = arith.constant dense<0.000000e+00> : vector<16xf32>
    %44 = vector.multi_reduction <add>, %41, %cst_20 [1] : vector<16x32xf32> to vector<16xf32>
    %45 = vector.shape_cast %44 : vector<16xf32> to vector<16x1xf32>
    %cst_21 = arith.constant 3.200000e+01 : f32
    %46 = vector.broadcast %cst_21 : f32 to vector<16x1xf32>
    %47 = arith.divf %45, %46 : vector<16x1xf32>
    %48 = vector.broadcast %47 : vector<16x1xf32> to vector<16x32xf32>
    %49 = arith.subf %41, %48 : vector<16x32xf32>
    %50 = arith.mulf %49, %49 : vector<16x32xf32>
    %cst_22 = arith.constant dense<0.000000e+00> : vector<16xf32>
    %51 = vector.multi_reduction <add>, %50, %cst_22 [1] : vector<16x32xf32> to vector<16xf32>
    %52 = vector.shape_cast %51 : vector<16xf32> to vector<16x1xf32>
    %cst_23 = arith.constant 3.200000e+01 : f32
    %53 = vector.broadcast %cst_23 : f32 to vector<16x1xf32>
    %54 = arith.divf %52, %53 : vector<16x1xf32>
    %55 = vector.broadcast %47 : vector<16x1xf32> to vector<16x32xf32>
    %56 = arith.subf %41, %55 : vector<16x32xf32>
    %cst_24 = arith.constant 9.99999996E-13 : f32
    %57 = vector.broadcast %cst_24 : f32 to vector<16x1xf32>
    %58 = arith.addf %54, %57 : vector<16x1xf32>
    %59 = math.rsqrt %58 : vector<16x1xf32>
    %60 = vector.broadcast %59 : vector<16x1xf32> to vector<16x32xf32>
    %61 = arith.mulf %56, %60 : vector<16x32xf32>
    %62 = vector.broadcast %42 : vector<1x32xf32> to vector<16x32xf32>
    %63 = arith.mulf %61, %62 : vector<16x32xf32>
    %64 = vector.broadcast %43 : vector<1x32xf32> to vector<16x32xf32>
    %65 = arith.addf %63, %64 : vector<16x32xf32>
    %c0_25 = arith.constant 0 : index
    %c0_26 = arith.constant 0 : index
    %66 = vector.load %arg9[%c0_25, %c0_26] : memref<32x32xf32, #tpu.memory_space<vmem>>, vector<32x32xf32>
    %cst_27 = arith.constant dense<0.000000e+00> : vector<16x32xf32>
    %67 = tpu.matmul %65, %66, %cst_27 {dimension_numbers = #tpu.dot_dimension_numbers<[1], [0], [0], [1], [0, 0, 1, 1], [], []>} : vector<16x32xf32>, vector<32x32xf32>, vector<16x32xf32> -> vector<16x32xf32>
    %c0_28 = arith.constant 0 : index
    %c0_29 = arith.constant 0 : index
    %68 = vector.load %arg10[%c0_28, %c0_29] : memref<32x32xf32, #tpu.memory_space<vmem>>, vector<32x32xf32>
    %cst_30 = arith.constant dense<0.000000e+00> : vector<16x32xf32>
    %69 = tpu.matmul %65, %68, %cst_30 {dimension_numbers = #tpu.dot_dimension_numbers<[1], [0], [0], [1], [0, 0, 1, 1], [], []>} : vector<16x32xf32>, vector<32x32xf32>, vector<16x32xf32> -> vector<16x32xf32>
    %c0_31 = arith.constant 0 : index
    %c0_32 = arith.constant 0 : index
    %70 = vector.load %arg11[%c0_31, %c0_32] : memref<32x32xf32, #tpu.memory_space<vmem>>, vector<32x32xf32>
    %cst_33 = arith.constant dense<0.000000e+00> : vector<16x32xf32>
    %71 = tpu.matmul %65, %70, %cst_33 {dimension_numbers = #tpu.dot_dimension_numbers<[1], [0], [0], [1], [0, 0, 1, 1], [], []>} : vector<16x32xf32>, vector<32x32xf32>, vector<16x32xf32> -> vector<16x32xf32>
    %72 = vector.shape_cast %67 : vector<16x32xf32> to vector<2x8x32xf32>
    %73 = vector.shape_cast %69 : vector<16x32xf32> to vector<2x8x32xf32>
    %74 = vector.shape_cast %71 : vector<16x32xf32> to vector<2x8x32xf32>
    "tpu.trace_start"() <{level = 10 : i32, message = "bqd,bkd->bqk"}> : () -> ()
    %cst_34 = arith.constant dense<0.000000e+00> : vector<2x8x8xf32>
    %75 = tpu.matmul %72, %73, %cst_34 {dimension_numbers = #tpu.dot_dimension_numbers<[2], [2], [1], [1], [0, 0, 0, 1, 1, 1], [0], [0]>} : vector<2x8x32xf32>, vector<2x8x32xf32>, vector<2x8x8xf32> -> vector<2x8x8xf32>
    "tpu.trace_stop"() : () -> ()
    %76 = vector.broadcast %12 : vector<2x1x8xf32> to vector<2x8x8xf32>
    %77 = arith.addf %75, %76 : vector<2x8x8xf32>
    %cst_35 = arith.constant dense<0xFF800000> : vector<2x8xf32>
    %78 = vector.multi_reduction <maximumf>, %77, %cst_35 [2] : vector<2x8x8xf32> to vector<2x8xf32>
    %79 = vector.shape_cast %78 : vector<2x8xf32> to vector<2x8x1xf32>
    %80 = vector.broadcast %79 : vector<2x8x1xf32> to vector<2x8x8xf32>
    %81 = arith.subf %77, %80 : vector<2x8x8xf32>
    %82 = math.exp %81 : vector<2x8x8xf32>
    %cst_36 = arith.constant dense<0.000000e+00> : vector<2x8xf32>
    %83 = vector.multi_reduction <add>, %82, %cst_36 [2] : vector<2x8x8xf32> to vector<2x8xf32>
    %84 = vector.shape_cast %83 : vector<2x8xf32> to vector<2x8x1xf32>
    %85 = tpu.reciprocal %84 {approx = true} : vector<2x8x1xf32> -> vector<2x8x1xf32>
    %86 = vector.broadcast %85 : vector<2x8x1xf32> to vector<2x8x8xf32>
    %87 = arith.mulf %82, %86 : vector<2x8x8xf32>
    "tpu.trace_start"() <{level = 10 : i32, message = "bqk,bkd->bqd"}> : () -> ()
    %cst_37 = arith.constant dense<0.000000e+00> : vector<2x8x32xf32>
    %88 = tpu.matmul %87, %74, %cst_37 {dimension_numbers = #tpu.dot_dimension_numbers<[2], [1], [1], [2], [0, 0, 0, 1, 1, 2], [0], [0]>} : vector<2x8x8xf32>, vector<2x8x32xf32>, vector<2x8x32xf32> -> vector<2x8x32xf32>
    "tpu.trace_stop"() : () -> ()
    %89 = vector.shape_cast %88 : vector<2x8x32xf32> to vector<16x32xf32>
    %c0_38 = arith.constant 0 : index
    %c0_39 = arith.constant 0 : index
    %90 = vector.load %arg12[%c0_38, %c0_39] : memref<32x32xf32, #tpu.memory_space<vmem>>, vector<32x32xf32>
    %cst_40 = arith.constant dense<0.000000e+00> : vector<16x32xf32>
    %91 = tpu.matmul %89, %90, %cst_40 {dimension_numbers = #tpu.dot_dimension_numbers<[1], [0], [0], [1], [0, 0, 1, 1], [], []>} : vector<16x32xf32>, vector<32x32xf32>, vector<16x32xf32> -> vector<16x32xf32>
    %92 = arith.addf %65, %91 : vector<16x32xf32>
    %c0_41 = arith.constant 0 : index
    %c0_42 = arith.constant 0 : index
    %93 = vector.load %arg13[%c0_41, %c0_42] : memref<1x32xf32, #tpu.memory_space<vmem>>, vector<1x32xf32>
    %c0_43 = arith.constant 0 : index
    %c0_44 = arith.constant 0 : index
    %94 = vector.load %arg14[%c0_43, %c0_44] : memref<1x32xf32, #tpu.memory_space<vmem>>, vector<1x32xf32>
    %cst_45 = arith.constant dense<0.000000e+00> : vector<16xf32>
    %95 = vector.multi_reduction <add>, %92, %cst_45 [1] : vector<16x32xf32> to vector<16xf32>
    %96 = vector.shape_cast %95 : vector<16xf32> to vector<16x1xf32>
    %cst_46 = arith.constant 3.200000e+01 : f32
    %97 = vector.broadcast %cst_46 : f32 to vector<16x1xf32>
    %98 = arith.divf %96, %97 : vector<16x1xf32>
    %99 = vector.broadcast %98 : vector<16x1xf32> to vector<16x32xf32>
    %100 = arith.subf %92, %99 : vector<16x32xf32>
    %101 = arith.mulf %100, %100 : vector<16x32xf32>
    %cst_47 = arith.constant dense<0.000000e+00> : vector<16xf32>
    %102 = vector.multi_reduction <add>, %101, %cst_47 [1] : vector<16x32xf32> to vector<16xf32>
    %103 = vector.shape_cast %102 : vector<16xf32> to vector<16x1xf32>
    %cst_48 = arith.constant 3.200000e+01 : f32
    %104 = vector.broadcast %cst_48 : f32 to vector<16x1xf32>
    %105 = arith.divf %103, %104 : vector<16x1xf32>
    %106 = vector.broadcast %98 : vector<16x1xf32> to vector<16x32xf32>
    %107 = arith.subf %92, %106 : vector<16x32xf32>
    %cst_49 = arith.constant 9.99999996E-13 : f32
    %108 = vector.broadcast %cst_49 : f32 to vector<16x1xf32>
    %109 = arith.addf %105, %108 : vector<16x1xf32>
    %110 = math.rsqrt %109 : vector<16x1xf32>
    %111 = vector.broadcast %110 : vector<16x1xf32> to vector<16x32xf32>
    %112 = arith.mulf %107, %111 : vector<16x32xf32>
    %113 = vector.broadcast %93 : vector<1x32xf32> to vector<16x32xf32>
    %114 = arith.mulf %112, %113 : vector<16x32xf32>
    %115 = vector.broadcast %94 : vector<1x32xf32> to vector<16x32xf32>
    %116 = arith.addf %114, %115 : vector<16x32xf32>
    %c0_50 = arith.constant 0 : index
    %c0_51 = arith.constant 0 : index
    %117 = vector.load %arg15[%c0_50, %c0_51] : memref<32x128xf32, #tpu.memory_space<vmem>>, vector<32x128xf32>
    %cst_52 = arith.constant dense<0.000000e+00> : vector<16x128xf32>
    %118 = tpu.matmul %116, %117, %cst_52 {dimension_numbers = #tpu.dot_dimension_numbers<[1], [0], [0], [1], [0, 0, 1, 1], [], []>} : vector<16x32xf32>, vector<32x128xf32>, vector<16x128xf32> -> vector<16x128xf32>
    %c0_53 = arith.constant 0 : index
    %c0_54 = arith.constant 0 : index
    %119 = vector.load %arg16[%c0_53, %c0_54] : memref<1x128xf32, #tpu.memory_space<vmem>>, vector<1x128xf32>
    %120 = vector.broadcast %119 : vector<1x128xf32> to vector<16x128xf32>
    %121 = arith.addf %118, %120 : vector<16x128xf32>
    %cst_55 = arith.constant 5.000000e-01 : f32
    %122 = vector.broadcast %cst_55 : f32 to vector<16x128xf32>
    %123 = arith.mulf %122, %121 : vector<16x128xf32>
    %cst_56 = arith.constant 4.471500e-02 : f32
    %124 = vector.broadcast %cst_56 : f32 to vector<16x128xf32>
    %125 = arith.mulf %124, %121 : vector<16x128xf32>
    %126 = arith.mulf %125, %121 : vector<16x128xf32>
    %127 = arith.mulf %126, %121 : vector<16x128xf32>
    %128 = arith.addf %121, %127 : vector<16x128xf32>
    %cst_57 = arith.constant 0.797884583 : f32
    %129 = vector.broadcast %cst_57 : f32 to vector<16x128xf32>
    %130 = arith.mulf %129, %128 : vector<16x128xf32>
    %131 = math.tanh %130 : vector<16x128xf32>
    %cst_58 = arith.constant 1.000000e+00 : f32
    %132 = vector.broadcast %cst_58 : f32 to vector<16x128xf32>
    %133 = arith.addf %132, %131 : vector<16x128xf32>
    %134 = arith.mulf %123, %133 : vector<16x128xf32>
    %c0_59 = arith.constant 0 : index
    %c0_60 = arith.constant 0 : index
    %135 = vector.load %arg17[%c0_59, %c0_60] : memref<128x32xf32, #tpu.memory_space<vmem>>, vector<128x32xf32>
    %cst_61 = arith.constant dense<0.000000e+00> : vector<16x32xf32>
    %136 = tpu.matmul %134, %135, %cst_61 {dimension_numbers = #tpu.dot_dimension_numbers<[1], [0], [0], [1], [0, 0, 1, 1], [], []>} : vector<16x128xf32>, vector<128x32xf32>, vector<16x32xf32> -> vector<16x32xf32>
    %c0_62 = arith.constant 0 : index
    %c0_63 = arith.constant 0 : index
    %137 = vector.load %arg18[%c0_62, %c0_63] : memref<1x32xf32, #tpu.memory_space<vmem>>, vector<1x32xf32>
    %138 = vector.broadcast %137 : vector<1x32xf32> to vector<16x32xf32>
    %139 = arith.addf %136, %138 : vector<16x32xf32>
    %140 = arith.addf %116, %139 : vector<16x32xf32>
    %c0_64 = arith.constant 0 : index
    %c0_65 = arith.constant 0 : index
    %141 = vector.load %arg19[%c0_64, %c0_65] : memref<1x32xf32, #tpu.memory_space<vmem>>, vector<1x32xf32>
    %c0_66 = arith.constant 0 : index
    %c0_67 = arith.constant 0 : index
    %142 = vector.load %arg20[%c0_66, %c0_67] : memref<1x32xf32, #tpu.memory_space<vmem>>, vector<1x32xf32>
    %cst_68 = arith.constant dense<0.000000e+00> : vector<16xf32>
    %143 = vector.multi_reduction <add>, %140, %cst_68 [1] : vector<16x32xf32> to vector<16xf32>
    %144 = vector.shape_cast %143 : vector<16xf32> to vector<16x1xf32>
    %cst_69 = arith.constant 3.200000e+01 : f32
    %145 = vector.broadcast %cst_69 : f32 to vector<16x1xf32>
    %146 = arith.divf %144, %145 : vector<16x1xf32>
    %147 = vector.broadcast %146 : vector<16x1xf32> to vector<16x32xf32>
    %148 = arith.subf %140, %147 : vector<16x32xf32>
    %149 = arith.mulf %148, %148 : vector<16x32xf32>
    %cst_70 = arith.constant dense<0.000000e+00> : vector<16xf32>
    %150 = vector.multi_reduction <add>, %149, %cst_70 [1] : vector<16x32xf32> to vector<16xf32>
    %151 = vector.shape_cast %150 : vector<16xf32> to vector<16x1xf32>
    %cst_71 = arith.constant 3.200000e+01 : f32
    %152 = vector.broadcast %cst_71 : f32 to vector<16x1xf32>
    %153 = arith.divf %151, %152 : vector<16x1xf32>
    %154 = vector.broadcast %146 : vector<16x1xf32> to vector<16x32xf32>
    %155 = arith.subf %140, %154 : vector<16x32xf32>
    %cst_72 = arith.constant 9.99999996E-13 : f32
    %156 = vector.broadcast %cst_72 : f32 to vector<16x1xf32>
    %157 = arith.addf %153, %156 : vector<16x1xf32>
    %158 = math.rsqrt %157 : vector<16x1xf32>
    %159 = vector.broadcast %158 : vector<16x1xf32> to vector<16x32xf32>
    %160 = arith.mulf %155, %159 : vector<16x32xf32>
    %161 = vector.broadcast %141 : vector<1x32xf32> to vector<16x32xf32>
    %162 = arith.mulf %160, %161 : vector<16x32xf32>
    %163 = vector.broadcast %142 : vector<1x32xf32> to vector<16x32xf32>
    %164 = arith.addf %162, %163 : vector<16x32xf32>
    %165 = vector.shape_cast %164 : vector<16x32xf32> to vector<2x8x32xf32>
    %166 = vector.extract_strided_slice %165 {offsets = [0, 0, 0], sizes = [2, 1, 32], strides = [1, 1, 1]} : vector<2x8x32xf32> to vector<2x1x32xf32>
    %167 = vector.shape_cast %166 : vector<2x1x32xf32> to vector<2x32xf32>
    %c0_73 = arith.constant 0 : index
    %c0_74 = arith.constant 0 : index
    %168 = vector.load %arg21[%c0_73, %c0_74] : memref<32x32xf32, #tpu.memory_space<vmem>>, vector<32x32xf32>
    %cst_75 = arith.constant dense<0.000000e+00> : vector<2x32xf32>
    %169 = tpu.matmul %167, %168, %cst_75 {dimension_numbers = #tpu.dot_dimension_numbers<[1], [0], [0], [1], [0, 0, 1, 1], [], []>} : vector<2x32xf32>, vector<32x32xf32>, vector<2x32xf32> -> vector<2x32xf32>
    %c0_76 = arith.constant 0 : index
    %c0_77 = arith.constant 0 : index
    %170 = vector.load %arg22[%c0_76, %c0_77] : memref<1x32xf32, #tpu.memory_space<vmem>>, vector<1x32xf32>
    %171 = vector.broadcast %170 : vector<1x32xf32> to vector<2x32xf32>
    %172 = arith.addf %169, %171 : vector<2x32xf32>
    %173 = math.tanh %172 : vector<2x32xf32>
    %c0_78 = arith.constant 0 : index
    %c0_79 = arith.constant 0 : index
    %174 = vector.load %arg23[%c0_78, %c0_79] : memref<32x128xf32, #tpu.memory_space<vmem>>, vector<32x128xf32>
    %cst_80 = arith.constant dense<0.000000e+00> : vector<2x128xf32>
    %175 = tpu.matmul %173, %174, %cst_80 {dimension_numbers = #tpu.dot_dimension_numbers<[1], [0], [0], [1], [0, 0, 1, 1], [], []>} : vector<2x32xf32>, vector<32x128xf32>, vector<2x128xf32> -> vector<2x128xf32>
    %c0_81 = arith.constant 0 : index
    %c0_82 = arith.constant 0 : index
    %176 = vector.load %arg24[%c0_81, %c0_82] : memref<1x128xf32, #tpu.memory_space<vmem>>, vector<1x128xf32>
    %177 = vector.broadcast %176 : vector<1x128xf32> to vector<2x128xf32>
    %178 = arith.addf %175, %177 : vector<2x128xf32>
    %c0_83 = arith.constant 0 : index
    %c0_84 = arith.constant 0 : index
    %179 = vector.load %arg25[%c0_83, %c0_84] : memref<2x128xf32, #tpu.memory_space<vmem>>, vector<2x128xf32>
    tpu.vector_store %arg25[%c0_83, %c0_84], %178 {strides = array<i32>} : memref<2x128xf32, #tpu.memory_space<vmem>>, vector<2x128xf32>,
    return
  }
  func.func @transform_0(%arg0: i32) -> (i32, i32, i32) {
    %c0_i32 = arith.constant 0 : i32
    %c0_i32_0 = arith.constant 0 : i32
    %c0_i32_1 = arith.constant 0 : i32
    %c0_i32_2 = arith.constant 0 : i32
    return %c0_i32, %c0_i32_0, %c0_i32_1 : i32, i32, i32
  }
  func.func @transform_1(%arg0: i32) -> (i32, i32, i32) {
    %c0_i32 = arith.constant 0 : i32
    %c0_i32_0 = arith.constant 0 : i32
    %c0_i32_1 = arith.constant 0 : i32
    %c0_i32_2 = arith.constant 0 : i32
    return %c0_i32, %c0_i32_0, %c0_i32_1 : i32, i32, i32
  }
  func.func @transform_2(%arg0: i32) -> i32 {
    %c0_i32 = arith.constant 0 : i32
    %c0_i32_0 = arith.constant 0 : i32
    return %c0_i32 : i32
  }
  func.func @transform_3(%arg0: i32) -> (i32, i32) {
    %c0_i32 = arith.constant 0 : i32
    %c0_i32_0 = arith.constant 0 : i32
    %c0_i32_1 = arith.constant 0 : i32
    return %c0_i32, %c0_i32_0 : i32, i32
  }
  func.func @transform_4(%arg0: i32) -> (i32, i32) {
    %c0_i32 = arith.constant 0 : i32
    %c0_i32_0 = arith.constant 0 : i32
    %c0_i32_1 = arith.constant 0 : i32
    return %c0_i32, %c0_i32_0 : i32, i32
  }
  func.func @transform_5(%arg0: i32) -> (i32, i32) {
    %c0_i32 = arith.constant 0 : i32
    %c0_i32_0 = arith.constant 0 : i32
    %c0_i32_1 = arith.constant 0 : i32
    return %c0_i32, %c0_i32_0 : i32, i32
  }
  func.func @transform_6(%arg0: i32) -> (i32, i32) {
    %c0_i32 = arith.constant 0 : i32
    %c0_i32_0 = arith.constant 0 : i32
    %c0_i32_1 = arith.constant 0 : i32
    return %c0_i32, %c0_i32_0 : i32, i32
  }
  func.func @transform_7(%arg0: i32) -> (i32, i32) {
    %c0_i32 = arith.constant 0 : i32
    %c0_i32_0 = arith.constant 0 : i32
    %c0_i32_1 = arith.constant 0 : i32
    return %c0_i32, %c0_i32_0 : i32, i32
  }
  func.func @transform_8(%arg0: i32) -> (i32, i32) {
    %c0_i32 = arith.constant 0 : i32
    %c0_i32_0 = arith.constant 0 : i32
    %c0_i32_1 = arith.constant 0 : i32
    return %c0_i32, %c0_i32_0 : i32, i32
  }
  func.func @transform_9(%arg0: i32) -> (i32, i32) {
    %c0_i32 = arith.constant 0 : i32
    %c0_i32_0 = arith.constant 0 : i32
    %c0_i32_1 = arith.constant 0 : i32
    return %c0_i32, %c0_i32_0 : i32, i32
  }
  func.func @transform_10(%arg0: i32) -> (i32, i32) {
    %c0_i32 = arith.constant 0 : i32
    %c0_i32_0 = arith.constant 0 : i32
    %c0_i32_1 = arith.constant 0 : i32
    return %c0_i32, %c0_i32_0 : i32, i32
  }
  func.func @transform_11(%arg0: i32) -> (i32, i32) {
    %c0_i32 = arith.constant 0 : i32
    %c0_i32_0 = arith.constant 0 : i32
    %c0_i32_1 = arith.constant 0 : i32
    return %c0_i32, %c0_i32_0 : i32, i32
  }
  func.func @transform_12(%arg0: i32) -> (i32, i32) {
    %c0_i32 = arith.constant 0 : i32
    %c0_i32_0 = arith.constant 0 : i32
    %c0_i32_1 = arith.constant 0 : i32
    return %c0_i32, %c0_i32_0 : i32, i32
  }
  func.func @transform_13(%arg0: i32) -> (i32, i32) {
    %c0_i32 = arith.constant 0 : i32
    %c0_i32_0 = arith.constant 0 : i32
    %c0_i32_1 = arith.constant 0 : i32
    return %c0_i32, %c0_i32_0 : i32, i32
  }
  func.func @transform_14(%arg0: i32) -> (i32, i32) {
    %c0_i32 = arith.constant 0 : i32
    %c0_i32_0 = arith.constant 0 : i32
    %c0_i32_1 = arith.constant 0 : i32
    return %c0_i32, %c0_i32_0 : i32, i32
  }
  func.func @transform_15(%arg0: i32) -> (i32, i32) {
    %c0_i32 = arith.constant 0 : i32
    %c0_i32_0 = arith.constant 0 : i32
    %c0_i32_1 = arith.constant 0 : i32
    return %c0_i32, %c0_i32_0 : i32, i32
  }
  func.func @transform_16(%arg0: i32) -> (i32, i32) {
    %c0_i32 = arith.constant 0 : i32
    %c0_i32_0 = arith.constant 0 : i32
    %c0_i32_1 = arith.constant 0 : i32
    return %c0_i32, %c0_i32_0 : i32, i32
  }
  func.func @transform_17(%arg0: i32) -> (i32, i32) {
    %c0_i32 = arith.constant 0 : i32
    %c0_i32_0 = arith.constant 0 : i32
    %c0_i32_1 = arith.constant 0 : i32
    return %c0_i32, %c0_i32_0 : i32, i32
  }
  func.func @transform_18(%arg0: i32) -> (i32, i32) {
    %c0_i32 = arith.constant 0 : i32
    %c0_i32_0 = arith.constant 0 : i32
    %c0_i32_1 = arith.constant 0 : i32
    return %c0_i32, %c0_i32_0 : i32, i32
  }
  func.func @transform_19(%arg0: i32) -> (i32, i32) {
    %c0_i32 = arith.constant 0 : i32
    %c0_i32_0 = arith.constant 0 : i32
    %c0_i32_1 = arith.constant 0 : i32
    return %c0_i32, %c0_i32_0 : i32, i32
  }
  func.func @transform_20(%arg0: i32) -> (i32, i32) {
    %c0_i32 = arith.constant 0 : i32
    %c0_i32_0 = arith.constant 0 : i32
    %c0_i32_1 = arith.constant 0 : i32
    return %c0_i32, %c0_i32_0 : i32, i32
  }
  func.func @transform_21(%arg0: i32) -> (i32, i32) {
    %c0_i32 = arith.constant 0 : i32
    %c0_i32_0 = arith.constant 0 : i32
    %c0_i32_1 = arith.constant 0 : i32
    return %c0_i32, %c0_i32_0 : i32, i32
  }
  func.func @transform_22(%arg0: i32) -> (i32, i32) {
    %c0_i32 = arith.constant 0 : i32
    %c0_i32_0 = arith.constant 0 : i32
    %c0_i32_1 = arith.constant 0 : i32
    return %c0_i32, %c0_i32_0 : i32, i32
  }
  func.func @transform_23(%arg0: i32) -> (i32, i32) {
    %c0_i32 = arith.constant 0 : i32
    %c0_i32_0 = arith.constant 0 : i32
    %c0_i32_1 = arith.constant 0 : i32
    return %c0_i32, %c0_i32_0 : i32, i32
  }
  func.func @transform_24(%arg0: i32) -> (i32, i32) {
    %c0_i32 = arith.constant 0 : i32
    %c0_i32_0 = arith.constant 0 : i32
    %c0_i32_1 = arith.constant 0 : i32
    return %c0_i32, %c0_i32_0 : i32, i32
  }
}

</mosaic_0001>

<llo_original>
// kernel: bert_classifier_forward.1
$region0: #{bert_classifier_forward.1}
  #allocation0 [shape = 'u32[]', space=smem, size = 0x4, offset = 0x4, fixed_abs, tag = 'smem constant byte address 0x4 - core index']
  #allocation1 [shape = 'u32[144,128]{1,0:T(1,128)}', space=vmem, size = 0x12000, scoped, tag = 'internal scratch']
  %s0 = inlined_call_operand.vmem [shape: s32[2,8,1], index: 0, kind: input, shape index: {}]
  %s1 = inlined_call_operand.vmem [shape: s32[2,8,1], index: 1, kind: input, shape index: {}]
  %s2 = inlined_call_operand.vmem [shape: s32[2], index: 2, kind: input, shape index: {}]
  %s3 = inlined_call_operand.vmem [shape: f32[64,32], index: 3, kind: input, shape index: {}]
  %s4 = inlined_call_operand.vmem [shape: f32[2,32], index: 4, kind: input, shape index: {}]
  %s5 = inlined_call_operand.vmem [shape: f32[8,32], index: 5, kind: input, shape index: {}]
  %s6 = inlined_call_operand.vmem [shape: f32[1,32], index: 6, kind: input, shape index: {}]
  %s7 = inlined_call_operand.vmem [shape: f32[1,32], index: 7, kind: input, shape index: {}]
  %s8 = inlined_call_operand.vmem [shape: f32[32,32], index: 8, kind: input, shape index: {}]
  %s9 = inlined_call_operand.vmem [shape: f32[32,32], index: 9, kind: input, shape index: {}]
  %s10 = inlined_call_operand.vmem [shape: f32[32,32], index: 10, kind: input, shape index: {}]
  %s11 = inlined_call_operand.vmem [shape: f32[32,32], index: 11, kind: input, shape index: {}]
  %s12 = inlined_call_operand.vmem [shape: f32[1,32], index: 12, kind: input, shape index: {}]
  %s13 = inlined_call_operand.vmem [shape: f32[1,32], index: 13, kind: input, shape index: {}]
  %s14 = inlined_call_operand.vmem [shape: f32[32,128], index: 14, kind: input, shape index: {}]
  %s15 = inlined_call_operand.vmem [shape: f32[1,128], index: 15, kind: input, shape index: {}]
  %s16 = inlined_call_operand.vmem [shape: f32[128,32], index: 16, kind: input, shape index: {}]
  %s17 = inlined_call_operand.vmem [shape: f32[1,32], index: 17, kind: input, shape index: {}]
  %s18 = inlined_call_operand.vmem [shape: f32[1,32], index: 18, kind: input, shape index: {}]
  %s19 = inlined_call_operand.vmem [shape: f32[1,32], index: 19, kind: input, shape index: {}]
  %s20 = inlined_call_operand.vmem [shape: f32[32,32], index: 20, kind: input, shape index: {}]
  %s21 = inlined_call_operand.vmem [shape: f32[1,32], index: 21, kind: input, shape index: {}]
  %s22 = inlined_call_operand.vmem [shape: f32[32,128], index: 22, kind: input, shape index: {}]
  %s23 = inlined_call_operand.vmem [shape: f32[1,128], index: 23, kind: input, shape index: {}]
  %s24 = inlined_call_operand.hbm [shape: f32[2,128], index: 24, kind: output, shape index: {}]
  %s25 = sld [smem:[#allocation0]]
  $region110: #{bert_classifier_forward.1} parent=0
    _
  %s27 = ssub.s32 1, %s25
  %s28 = scalar_select 0, %s27, %s25
  $region1: #{bert_classifier_forward.1} parent=0
    #allocation2 [shape = 'u8[512]{0}', space=smem, size = 0x200, scoped, tag = 'input window, operand 2, single buffered']
    #allocation3 [shape = 's32[1]{0}', space=sflag, size = 0x4, scoped, tag = 'scoped memory for bert_classifier_forward.1']
    #allocation4 [shape = 's32[1]{0}', space=sflag, size = 0x4, scoped, tag = 'scoped memory for bert_classifier_forward.1']
    #allocation5 [shape = 'u8[1024]{0}', space=vmem, size = 0x400, scoped, tag = 'output window, operand 0, single buffered']
    %29 = vsyncpa [#allocation4], 0
    %30 = vsyncpa [#allocation3], 0
    // Predicated region
    $region2: #{bert_classifier_forward.1} parent=1 // pred_check
      _
    $region3: #{bert_classifier_forward.1} parent=1 // pred_check_branch
      %32 = sbr.rel (0) target = $region5
    $region4: #{bert_classifier_forward.1} parent=1 // pred_region
      _
    $region5: #{bert_classifier_forward.1} parent=1 // pred_fallthru
      _
    // Predicated region
    $region6: #{bert_classifier_forward.1} parent=1 // pred_check
      _
    $region7: #{bert_classifier_forward.1} parent=1 // pred_check_branch
      %34 = sbr.rel (0) target = $region9
    $region8: #{bert_classifier_forward.1} parent=1 // pred_region
      _
    $region9: #{bert_classifier_forward.1} parent=1 // pred_fallthru
      _
    // Predicated region
    $region10: #{bert_classifier_forward.1} parent=1 // pred_check
      _
    $region11: #{bert_classifier_forward.1} parent=1 // pred_check_branch
      %36 = sbr.rel (0) target = $region13
    $region12: #{bert_classifier_forward.1} parent=1 // pred_region
      %s38 = ssub.s32 16, 16
      %39 = vsyncadd [#allocation4], %s38
      %s41 = sshll.u32 %s2, 4
      %s42 = int_to_ptr.vmem [resolvable:$true] %s41
      %44 = dma.vmem_to_smem %s42, 16, [#allocation2], [#allocation4]
    $region13: #{bert_classifier_forward.1} parent=1 // pred_fallthru
      _
    // Predicated region
    $region14: #{bert_classifier_forward.1} parent=1 // pred_check
      _
    $region15: #{bert_classifier_forward.1} parent=1 // pred_check_branch
      %46 = sbr.rel (0) target = $region17
    $region16: #{bert_classifier_forward.1} parent=1 // pred_region
      _
    $region17: #{bert_classifier_forward.1} parent=1 // pred_fallthru
      _
    // Predicated region
    $region18: #{bert_classifier_forward.1} parent=1 // pred_check
      _
    $region19: #{bert_classifier_forward.1} parent=1 // pred_check_branch
      %48 = sbr.rel (0) target = $region21
    $region20: #{bert_classifier_forward.1} parent=1 // pred_region
      _
    $region21: #{bert_classifier_forward.1} parent=1 // pred_fallthru
      _
    // Predicated region
    $region22: #{bert_classifier_forward.1} parent=1 // pred_check
      _
    $region23: #{bert_classifier_forward.1} parent=1 // pred_check_branch
      %50 = sbr.rel (0) target = $region25
    $region24: #{bert_classifier_forward.1} parent=1 // pred_region
      _
    $region25: #{bert_classifier_forward.1} parent=1 // pred_fallthru
      _
    // Predicated region
    $region26: #{bert_classifier_forward.1} parent=1 // pred_check
      _
    $region27: #{bert_classifier_forward.1} parent=1 // pred_check_branch
      %52 = sbr.rel (0) target = $region29
    $region28: #{bert_classifier_forward.1} parent=1 // pred_region
      _
    $region29: #{bert_classifier_forward.1} parent=1 // pred_fallthru
      _
    // Predicated region
    $region30: #{bert_classifier_forward.1} parent=1 // pred_check
      _
    $region31: #{bert_classifier_forward.1} parent=1 // pred_check_branch
      %54 = sbr.rel (0) target = $region33
    $region32: #{bert_classifier_forward.1} parent=1 // pred_region
      _
    $region33: #{bert_classifier_forward.1} parent=1 // pred_fallthru
      _
    // Predicated region
    $region34: #{bert_classifier_forward.1} parent=1 // pred_check
      _
    $region35: #{bert_classifier_forward.1} parent=1 // pred_check_branch
      %56 = sbr.rel (0) target = $region37
    $region36: #{bert_classifier_forward.1} parent=1 // pred_region
      _
    $region37: #{bert_classifier_forward.1} parent=1 // pred_fallthru
      _
    // Predicated region
    $region38: #{bert_classifier_forward.1} parent=1 // pred_check
      _
    $region39: #{bert_classifier_forward.1} parent=1 // pred_check_branch
      %58 = sbr.rel (0) target = $region41
    $region40: #{bert_classifier_forward.1} parent=1 // pred_region
      _
    $region41: #{bert_classifier_forward.1} parent=1 // pred_fallthru
      _
    // Predicated region
    $region42: #{bert_classifier_forward.1} parent=1 // pred_check
      _
    $region43: #{bert_classifier_forward.1} parent=1 // pred_check_branch
      %60 = sbr.rel (0) target = $region45
    $region44: #{bert_classifier_forward.1} parent=1 // pred_region
      _
    $region45: #{bert_classifier_forward.1} parent=1 // pred_fallthru
      _
    // Predicated region
    $region46: #{bert_classifier_forward.1} parent=1 // pred_check
      _
    $region47: #{bert_classifier_forward.1} parent=1 // pred_check_branch
      %62 = sbr.rel (0) target = $region49
    $region48: #{bert_classifier_forward.1} parent=1 // pred_region
      _
    $region49: #{bert_classifier_forward.1} parent=1 // pred_fallthru
      _
    // Predicated region
    $region50: #{bert_classifier_forward.1} parent=1 // pred_check
      _
    $region51: #{bert_classifier_forward.1} parent=1 // pred_check_branch
      %64 = sbr.rel (0) target = $region53
    $region52: #{bert_classifier_forward.1} parent=1 // pred_region
      _
    $region53: #{bert_classifier_forward.1} parent=1 // pred_fallthru
      _
    // Predicated region
    $region54: #{bert_classifier_forward.1} parent=1 // pred_check
      _
    $region55: #{bert_classifier_forward.1} parent=1 // pred_check_branch
      %66 = sbr.rel (0) target = $region57
    $region56: #{bert_classifier_forward.1} parent=1 // pred_region
      _
    $region57: #{bert_classifier_forward.1} parent=1 // pred_fallthru
      _
    // Predicated region
    $region58: #{bert_classifier_forward.1} parent=1 // pred_check
      _
    $region59: #{bert_classifier_forward.1} parent=1 // pred_check_branch
      %68 = sbr.rel (0) target = $region61
    $region60: #{bert_classifier_forward.1} parent=1 // pred_region
      _
    $region61: #{bert_classifier_forward.1} parent=1 // pred_fallthru
      _
    // Predicated region
    $region62: #{bert_classifier_forward.1} parent=1 // pred_check
      _
    $region63: #{bert_classifier_forward.1} parent=1 // pred_check_branch
      %70 = sbr.rel (0) target = $region65
    $region64: #{bert_classifier_forward.1} parent=1 // pred_region
      _
    $region65: #{bert_classifier_forward.1} parent=1 // pred_fallthru
      _
    // Predicated region
    $region66: #{bert_classifier_forward.1} parent=1 // pred_check
      _
    $region67: #{bert_classifier_forward.1} parent=1 // pred_check_branch
      %72 = sbr.rel (0) target = $region69
    $region68: #{bert_classifier_forward.1} parent=1 // pred_region
      _
    $region69: #{bert_classifier_forward.1} parent=1 // pred_fallthru
      _
    // Predicated region
    $region70: #{bert_classifier_forward.1} parent=1 // pred_check
      _
    $region71: #{bert_classifier_forward.1} parent=1 // pred_check_branch
      %74 = sbr.rel (0) target = $region73
    $region72: #{bert_classifier_forward.1} parent=1 // pred_region
      _
    $region73: #{bert_classifier_forward.1} parent=1 // pred_fallthru
      _
    // Predicated region
    $region74: #{bert_classifier_forward.1} parent=1 // pred_check
      _
    $region75: #{bert_classifier_forward.1} parent=1 // pred_check_branch
      %76 = sbr.rel (0) target = $region77
    $region76: #{bert_classifier_forward.1} parent=1 // pred_region
      _
    $region77: #{bert_classifier_forward.1} parent=1 // pred_fallthru
      _
    // Predicated region
    $region78: #{bert_classifier_forward.1} parent=1 // pred_check
      _
    $region79: #{bert_classifier_forward.1} parent=1 // pred_check_branch
      %78 = sbr.rel (0) target = $region81
    $region80: #{bert_classifier_forward.1} parent=1 // pred_region
      _
    $region81: #{bert_classifier_forward.1} parent=1 // pred_fallthru
      _
    // Predicated region
    $region82: #{bert_classifier_forward.1} parent=1 // pred_check
      _
    $region83: #{bert_classifier_forward.1} parent=1 // pred_check_branch
      %80 = sbr.rel (0) target = $region85
    $region84: #{bert_classifier_forward.1} parent=1 // pred_region
      _
    $region85: #{bert_classifier_forward.1} parent=1 // pred_fallthru
      _
    // Predicated region
    $region86: #{bert_classifier_forward.1} parent=1 // pred_check
      _
    $region87: #{bert_classifier_forward.1} parent=1 // pred_check_branch
      %82 = sbr.rel (0) target = $region89
    $region88: #{bert_classifier_forward.1} parent=1 // pred_region
      _
    $region89: #{bert_classifier_forward.1} parent=1 // pred_fallthru
      _
    // Predicated region
    $region90: #{bert_classifier_forward.1} parent=1 // pred_check
      _
    $region91: #{bert_classifier_forward.1} parent=1 // pred_check_branch
      %84 = sbr.rel (0) target = $region93
    $region92: #{bert_classifier_forward.1} parent=1 // pred_region
      _
    $region93: #{bert_classifier_forward.1} parent=1 // pred_fallthru
      _
    // Predicated region
    $region94: #{bert_classifier_forward.1} parent=1 // pred_check
      _
    $region95: #{bert_classifier_forward.1} parent=1 // pred_check_branch
      %86 = sbr.rel (0) target = $region97
    $region96: #{bert_classifier_forward.1} parent=1 // pred_region
      _
    $region97: #{bert_classifier_forward.1} parent=1 // pred_fallthru
      _
    // Predicated region
    $region98: #{bert_classifier_forward.1} parent=1 // pred_check
      _
    $region99: #{bert_classifier_forward.1} parent=1 // pred_check_branch
      %88 = sbr.rel (0) target = $region101
    $region100: #{bert_classifier_forward.1} parent=1 // pred_region
      %89 = dma.done [#allocation4], 16
    $region101: #{bert_classifier_forward.1} parent=1 // pred_fallthru
      _
    %90 = sfence
    %v91 = vlaneseq
    %v92 = vand.u32 %v91, 127
    %s93 = sld [smem:[#allocation2]]
    %v94 = vstv %s93
    %s95 = sld [smem:[#allocation2 + $0x1]]
    %v96 = vstv %s95
    %vm97 = vcmp.lt.s32.totalorder %v92, %v94
    %vm98 = vcmp.lt.s32.totalorder %v92, %v96
    %v99 = vsel %vm97, 0.0, -1e+09
    %v100 = vsel %vm98, 0.0, -1e+09
    %v101 = vld [vmem:[%s0] sm:$0xff]
    %v102 = vld [vmem:[%s0 + $0x8] sm:$0xff]
    %103 = vset.pattern.permute.xlu0 0
    %104 = vperm.xlu0 %103, %v101
    %v105 = vpop.permute.xlu0 %104
    %106 = vset.pattern.permute.xlu0 0
    %107 = vperm.xlu0 %106, %v102
    %v108 = vpop.permute.xlu0 %107
    %vm109 = vcmp.eq.s32.totalorder %v92, %v105
    %vm110 = vcmp.eq.s32.totalorder %v92, %v108
    %v111 = vsel %vm109, 1, 0
    %v112 = vsel %vm110, 1, 0
    %v113 = vcvt.s32.f32 %v111
    %v114 = vcvt.s32.f32 %v112
    %v115 = vld [vmem:[%s3] sm:$0xff]
    %v116 = vld [vmem:[%s3 + $0x8] sm:$0xff]
    %v117 = vld [vmem:[%s3 + $0x10] sm:$0xff]
    %v118 = vld [vmem:[%s3 + $0x18] sm:$0xff]
    %v119 = vld [vmem:[%s3 + $0x20] sm:$0xff]
    %v120 = vld [vmem:[%s3 + $0x28] sm:$0xff]
    %v121 = vld [vmem:[%s3 + $0x30] sm:$0xff]
    %v122 = vld [vmem:[%s3 + $0x38] sm:$0xff]
    %v123 = vld [vmem:[%s1] sm:$0xff]
    %v124 = vld [vmem:[%s1 + $0x8] sm:$0xff]
    %vm125 = vcmp.eq.s32.totalorder %v123, 0
    %vm126 = vcmp.eq.s32.totalorder %v124, 0
    %v127 = vld [vmem:[%s4] sm:$0x1]
    %v128 = vld [vmem:[%s4 + $0x1] sm:$0x1]
    %v129 = vsel %vm125, 1, 0
    %v130 = vsel %vm126, 1, 0
    %131 = vset.pattern.permute.xlu0 0
    %132 = vperm.xlu0 %131, %v129
    %v133 = vpop.permute.xlu0 %132
    %134 = vset.pattern.permute.xlu0 0
    %135 = vperm.xlu0 %134, %v130
    %v136 = vpop.permute.xlu0 %135
    %vm137 = vcmp.eq.s32.totalorder %v133, 1
    %vm138 = vcmp.eq.s32.totalorder %v136, 1
    %v139 = vlaneseq
    %v140 = vshrl.u32 %v139, 7
    %v141 = vsub.s32 0, %v140
    %v142 = vrot.slane %v127, %v141
    %v143 = vlaneseq
    %v144 = vshrl.u32 %v143, 7
    %v145 = vsub.s32 0, %v144
    %v146 = vrot.slane %v128, %v145
    %v147 = vsel %vm137, %v142, %v146
    %v148 = vsel %vm138, %v142, %v146
    %vm149 = vcmask 523264
    %v151 = vsel %vm149, %v113, 0
    %v154 = vsel %vm149, %v114, 0
    %156 = vmatprep.subr.mxu0 0.0
    %157 = vmatpush1.msra.mxu0 %v115
    %158 = vmatprep.subr.mxu0 0.0
    %159 = vmatpush1.msra.mxu0 %v116
    %160 = vmatprep.subr.mxu0 0.0
    %161 = vmatpush1.msra.mxu0 %v117
    %162 = vmatprep.subr.mxu0 0.0
    %163 = vmatpush1.msra.mxu0 %v118
    %164 = vmatprep.subr.mxu0 0.0
    %165 = vmatpush1.msra.mxu0 %v119
    %166 = vmatprep.subr.mxu0 0.0
    %167 = vmatpush1.msra.mxu0 %v120
    %168 = vmatprep.subr.mxu0 0.0
    %169 = vmatpush1.msra.mxu0 %v121
    %170 = vmatprep.subr.mxu0 0.0
    %171 = vmatpush1.msra.mxu0 %v122
    %172 = vmatprep.subr.mxu0 0.0
    %173 = vmatpush1.msra.mxu0 0.0
    %174 = vmatprep.subr.mxu0 0.0
    %175 = vmatpush1.msra.mxu0 0.0
    %176 = vmatprep.subr.mxu0 0.0
    %177 = vmatpush1.msra.mxu0 0.0
    %178 = vmatprep.subr.mxu0 0.0
    %179 = vmatpush1.msra.mxu0 0.0
    %180 = vmatprep.subr.mxu0 0.0
    %181 = vmatpush1.msra.mxu0 0.0
    %182 = vmatprep.subr.mxu0 0.0
    %183 = vmatpush1.msra.mxu0 0.0
    %184 = vmatprep.subr.mxu0 0.0
    %185 = vmatpush1.msra.mxu0 0.0
    %186 = vmatprep.subr.mxu0 0.0
    %187 = vmatpush1.msra.mxu0 0.0
    %188 = vmatprep.subr.mxu0 0.0
    %189 = vmatpush1.msra.mxu0 0.0
    %190 = vmatprep.subr.mxu0 0.0
    %191 = vmatpush1.msra.mxu0 0.0
    %192 = vmatprep.subr.mxu0 0.0
    %193 = vmatpush1.msra.mxu0 0.0
    %194 = vmatprep.subr.mxu0 0.0
    %195 = vmatpush1.msra.mxu0 0.0
    %196 = vmatprep.subr.mxu0 0.0
    %197 = vmatpush1.msra.mxu0 0.0
    %198 = vmatprep.subr.mxu0 0.0
    %199 = vmatpush1.msra.mxu0 0.0
    %200 = vmatprep.subr.mxu0 0.0
    %201 = vmatpush1.msra.mxu0 0.0
    %202 = vmatprep.subr.mxu0 0.0
    %203 = vmatpush1.msra.mxu0 0.0
    %204 = vmatprep.subr.mxu0 0.0
    %205 = vmatpush1.msra.mxu0 0.0
    %206 = vmatprep.subr.mxu0 0.0
    %207 = vmatpush1.msra.mxu0 0.0
    %208 = vmatprep.subr.mxu0 0.0
    %209 = vmatpush1.msra.mxu0 0.0
    %210 = vmatprep.subr.mxu0 0.0
    %211 = vmatpush1.msra.mxu0 0.0
    %212 = vmatprep.subr.mxu0 0.0
    %213 = vmatpush1.msra.mxu0 0.0
    %214 = vmatprep.subr.mxu0 0.0
    %215 = vmatpush1.msra.mxu0 0.0
    %216 = vmatprep.subr.mxu0 0.0
    %217 = vmatpush1.msra.mxu0 0.0
    %218 = vmatprep.subr.mxu0 0.0
    %219 = vmatpush1.msra.mxu0 0.0
    %220 = vmatprep.mubr.f32.mxu0 0.0
    %221 = vmatmul.mubr.f32.gmra.mrb[0].mxu0 %v151
    %v222 = vpop.f32.mrb[0].mxu0
    %v223 = vadd.f32 %v147, %v222
    %v224 = vpop.f32.mrb[0].mxu0
    %225 = vmatprep.mubr.f32.mxu0 0.0
    %226 = vmatmul.mubr.f32.gmra.mrb[0].mxu0 %v154
    %v227 = vpop.f32.mrb[0].mxu0
    %v228 = vadd.f32 %v148, %v227
    %v229 = vpop.f32.mrb[0].mxu0
    %230 = vdwg.mxu0
    %v231 = vld [vmem:[%s5] sm:$0xff]
    %v232 = vadd.f32 %v223, %v231
    %v233 = vadd.f32 %v228, %v231
    %v234 = vld [vmem:[%s6] sm:$0x1]
    %v235 = vld [vmem:[%s7] sm:$0x1]
    %vm236 = vcmask 261120
    %v237 = vsel %vm236, %v232, 0.0
    %238 = vadd.xlane.f32.xlu0 %v237
    %v239 = vpop.xlane.xlu0 %238
    %v240 = vsel %vm236, %v233, 0.0
    %241 = vadd.xlane.f32.xlu0 %v240
    %v242 = vpop.xlane.xlu0 %241
    %v243 = vrcp.pop 32.0
    %v244 = vmul.f32 %v239, %v243
    %v245 = vmul.f32 %v242, %v243
    %v246 = vsub.f32 %v232, %v244
    %v247 = vsub.f32 %v233, %v245
    %v248 = vmul.f32 %v246, %v246
    %v249 = vmul.f32 %v247, %v247
    %v250 = vsel %vm236, %v248, 0.0
    %251 = vadd.xlane.f32.xlu0 %v250
    %v252 = vpop.xlane.xlu0 %251
    %v253 = vsel %vm236, %v249, 0.0
    %254 = vadd.xlane.f32.xlu0 %v253
    %v255 = vpop.xlane.xlu0 %254
    %v256 = vmul.f32 %v252, %v243
    %v257 = vmul.f32 %v255, %v243
    %v258 = vadd.f32 %v256, 1e-12
    %v259 = vadd.f32 %v257, 1e-12
    %v260 = vrsqrt.pop %v258
    %v261 = vrsqrt.pop %v259
    %v262 = vmul.f32 %v246, %v260
    %v263 = vmul.f32 %v247, %v261
    %v265 = vlaneseq
    %v266 = vshrl.u32 %v265, 7
    %v267 = vsub.s32 0, %v266
    %v268 = vrot.slane %v234, %v267
    %v270 = vmul.f32 %v262, %v268
    %v271 = vmul.f32 %v263, %v268
    %v273 = vlaneseq
    %v274 = vshrl.u32 %v273, 7
    %v275 = vsub.s32 0, %v274
    %v276 = vrot.slane %v235, %v275
    %v278 = vadd.f32 %v270, %v276
    %v279 = vadd.f32 %v271, %v276
    %v280 = vld [vmem:[%s8] sm:$0xff]
    %v281 = vld [vmem:[%s8 + $0x8] sm:$0xff]
    %v282 = vld [vmem:[%s8 + $0x10] sm:$0xff]
    %v283 = vld [vmem:[%s8 + $0x18] sm:$0xff]
    %v285 = vsel %vm236, %v278, 0
    %v288 = vsel %vm236, %v279, 0
    %290 = vmatprep.subr.mxu0 0.0
    %291 = vmatpush1.msra.mxu0 %v280
    %292 = vmatprep.subr.mxu0 0.0
    %293 = vmatpush1.msra.mxu0 %v281
    %294 = vmatprep.subr.mxu0 0.0
    %295 = vmatpush1.msra.mxu0 %v282
    %296 = vmatprep.subr.mxu0 0.0
    %297 = vmatpush1.msra.mxu0 %v283
    %298 = vmatprep.subr.mxu0 0.0
    %299 = vmatpush1.msra.mxu0 0.0
    %300 = vmatprep.subr.mxu0 0.0
    %301 = vmatpush1.msra.mxu0 0.0
    %302 = vmatprep.subr.mxu0 0.0
    %303 = vmatpush1.msra.mxu0 0.0
    %304 = vmatprep.subr.mxu0 0.0
    %305 = vmatpush1.msra.mxu0 0.0
    %306 = vmatprep.subr.mxu0 0.0
    %307 = vmatpush1.msra.mxu0 0.0
    %308 = vmatprep.subr.mxu0 0.0
    %309 = vmatpush1.msra.mxu0 0.0
    %310 = vmatprep.subr.mxu0 0.0
    %311 = vmatpush1.msra.mxu0 0.0
    %312 = vmatprep.subr.mxu0 0.0
    %313 = vmatpush1.msra.mxu0 0.0
    %314 = vmatprep.subr.mxu0 0.0
    %315 = vmatpush1.msra.mxu0 0.0
    %316 = vmatprep.subr.mxu0 0.0
    %317 = vmatpush1.msra.mxu0 0.0
    %318 = vmatprep.subr.mxu0 0.0
    %319 = vmatpush1.msra.mxu0 0.0
    %320 = vmatprep.subr.mxu0 0.0
    %321 = vmatpush1.msra.mxu0 0.0
    %322 = vmatprep.subr.mxu0 0.0
    %323 = vmatpush1.msra.mxu0 0.0
    %324 = vmatprep.subr.mxu0 0.0
    %325 = vmatpush1.msra.mxu0 0.0
    %326 = vmatprep.subr.mxu0 0.0
    %327 = vmatpush1.msra.mxu0 0.0
    %328 = vmatprep.subr.mxu0 0.0
    %329 = vmatpush1.msra.mxu0 0.0
    %330 = vmatprep.subr.mxu0 0.0
    %331 = vmatpush1.msra.mxu0 0.0
    %332 = vmatprep.subr.mxu0 0.0
    %333 = vmatpush1.msra.mxu0 0.0
    %334 = vmatprep.subr.mxu0 0.0
    %335 = vmatpush1.msra.mxu0 0.0
    %336 = vmatprep.subr.mxu0 0.0
    %337 = vmatpush1.msra.mxu0 0.0
    %338 = vmatprep.subr.mxu0 0.0
    %339 = vmatpush1.msra.mxu0 0.0
    %340 = vmatprep.subr.mxu0 0.0
    %341 = vmatpush1.msra.mxu0 0.0
    %342 = vmatprep.subr.mxu0 0.0
    %343 = vmatpush1.msra.mxu0 0.0
    %344 = vmatprep.subr.mxu0 0.0
    %345 = vmatpush1.msra.mxu0 0.0
    %346 = vmatprep.subr.mxu0 0.0
    %347 = vmatpush1.msra.mxu0 0.0
    %348 = vmatprep.subr.mxu0 0.0
    %349 = vmatpush1.msra.mxu0 0.0
    %350 = vmatprep.subr.mxu0 0.0
    %351 = vmatpush1.msra.mxu0 0.0
    %352 = vmatprep.subr.mxu0 0.0
    %353 = vmatpush1.msra.mxu0 0.0
    %354 = vmatprep.mubr.f32.mxu0 0.0
    %355 = vmatmul.mubr.f32.gmra.mrb[0].mxu0 %v285
    %v356 = vpop.f32.mrb[0].mxu0
    %v357 = vadd.f32 0.0, %v356
    %v358 = vpop.f32.mrb[0].mxu0
    %359 = vmatprep.mubr.f32.mxu0 0.0
    %360 = vmatmul.mubr.f32.gmra.mrb[0].mxu0 %v288
    %v361 = vpop.f32.mrb[0].mxu0
    %v362 = vadd.f32 0.0, %v361
    %v363 = vpop.f32.mrb[0].mxu0
    %364 = vdwg.mxu0
    %v365 = vld [vmem:[%s9] sm:$0xff]
    %v366 = vld [vmem:[%s9 + $0x8] sm:$0xff]
    %v367 = vld [vmem:[%s9 + $0x10] sm:$0xff]
    %v368 = vld [vmem:[%s9 + $0x18] sm:$0xff]
    %369 = vmatprep.subr.mxu0 0.0
    %370 = vmatpush1.msra.mxu0 %v365
    %371 = vmatprep.subr.mxu0 0.0
    %372 = vmatpush1.msra.mxu0 %v366
    %373 = vmatprep.subr.mxu0 0.0
    %374 = vmatpush1.msra.mxu0 %v367
    %375 = vmatprep.subr.mxu0 0.0
    %376 = vmatpush1.msra.mxu0 %v368
    %377 = vmatprep.subr.mxu0 0.0
    %378 = vmatpush1.msra.mxu0 0.0
    %379 = vmatprep.subr.mxu0 0.0
    %380 = vmatpush1.msra.mxu0 0.0
    %381 = vmatprep.subr.mxu0 0.0
    %382 = vmatpush1.msra.mxu0 0.0
    %383 = vmatprep.subr.mxu0 0.0
    %384 = vmatpush1.msra.mxu0 0.0
    %385 = vmatprep.subr.mxu0 0.0
    %386 = vmatpush1.msra.mxu0 0.0
    %387 = vmatprep.subr.mxu0 0.0
    %388 = vmatpush1.msra.mxu0 0.0
    %389 = vmatprep.subr.mxu0 0.0
    %390 = vmatpush1.msra.mxu0 0.0
    %391 = vmatprep.subr.mxu0 0.0
    %392 = vmatpush1.msra.mxu0 0.0
    %393 = vmatprep.subr.mxu0 0.0
    %394 = vmatpush1.msra.mxu0 0.0
    %395 = vmatprep.subr.mxu0 0.0
    %396 = vmatpush1.msra.mxu0 0.0
    %397 = vmatprep.subr.mxu0 0.0
    %398 = vmatpush1.msra.mxu0 0.0
    %399 = vmatprep.subr.mxu0 0.0
    %400 = vmatpush1.msra.mxu0 0.0
    %401 = vmatprep.subr.mxu0 0.0
    %402 = vmatpush1.msra.mxu0 0.0
    %403 = vmatprep.subr.mxu0 0.0
    %404 = vmatpush1.msra.mxu0 0.0
    %405 = vmatprep.subr.mxu0 0.0
    %406 = vmatpush1.msra.mxu0 0.0
    %407 = vmatprep.subr.mxu0 0.0
    %408 = vmatpush1.msra.mxu0 0.0
    %409 = vmatprep.subr.mxu0 0.0
    %410 = vmatpush1.msra.mxu0 0.0
    %411 = vmatprep.subr.mxu0 0.0
    %412 = vmatpush1.msra.mxu0 0.0
    %413 = vmatprep.subr.mxu0 0.0
    %414 = vmatpush1.msra.mxu0 0.0
    %415 = vmatprep.subr.mxu0 0.0
    %416 = vmatpush1.msra.mxu0 0.0
    %417 = vmatprep.subr.mxu0 0.0
    %418 = vmatpush1.msra.mxu0 0.0
    %419 = vmatprep.subr.mxu0 0.0
    %420 = vmatpush1.msra.mxu0 0.0
    %421 = vmatprep.subr.mxu0 0.0
    %422 = vmatpush1.msra.mxu0 0.0
    %423 = vmatprep.subr.mxu0 0.0
    %424 = vmatpush1.msra.mxu0 0.0
    %425 = vmatprep.subr.mxu0 0.0
    %426 = vmatpush1.msra.mxu0 0.0
    %427 = vmatprep.subr.mxu0 0.0
    %428 = vmatpush1.msra.mxu0 0.0
    %429 = vmatprep.subr.mxu0 0.0
    %430 = vmatpush1.msra.mxu0 0.0
    %431 = vmatprep.subr.mxu0 0.0
    %432 = vmatpush1.msra.mxu0 0.0
    %433 = vmatprep.mubr.f32.mxu0 0.0
    %434 = vmatmul.mubr.f32.gmra.mrb[0].mxu0 %v285
    %v435 = vpop.f32.mrb[0].mxu0
    %v436 = vadd.f32 0.0, %v435
    %v437 = vpop.f32.mrb[0].mxu0
    %438 = vmatprep.mubr.f32.mxu0 0.0
    %439 = vmatmul.mubr.f32.gmra.mrb[0].mxu0 %v288
    %v440 = vpop.f32.mrb[0].mxu0
    %v441 = vadd.f32 0.0, %v440
    %v442 = vpop.f32.mrb[0].mxu0
    %443 = vdwg.mxu0
    %v444 = vld [vmem:[%s10] sm:$0xff]
    %v445 = vld [vmem:[%s10 + $0x8] sm:$0xff]
    %v446 = vld [vmem:[%s10 + $0x10] sm:$0xff]
    %v447 = vld [vmem:[%s10 + $0x18] sm:$0xff]
    %448 = vmatprep.subr.mxu0 0.0
    %449 = vmatpush1.msra.mxu0 %v444
    %450 = vmatprep.subr.mxu0 0.0
    %451 = vmatpush1.msra.mxu0 %v445
    %452 = vmatprep.subr.mxu0 0.0
    %453 = vmatpush1.msra.mxu0 %v446
    %454 = vmatprep.subr.mxu0 0.0
    %455 = vmatpush1.msra.mxu0 %v447
    %456 = vmatprep.subr.mxu0 0.0
    %457 = vmatpush1.msra.mxu0 0.0
    %458 = vmatprep.subr.mxu0 0.0
    %459 = vmatpush1.msra.mxu0 0.0
    %460 = vmatprep.subr.mxu0 0.0
    %461 = vmatpush1.msra.mxu0 0.0
    %462 = vmatprep.subr.mxu0 0.0
    %463 = vmatpush1.msra.mxu0 0.0
    %464 = vmatprep.subr.mxu0 0.0
    %465 = vmatpush1.msra.mxu0 0.0
    %466 = vmatprep.subr.mxu0 0.0
    %467 = vmatpush1.msra.mxu0 0.0
    %468 = vmatprep.subr.mxu0 0.0
    %469 = vmatpush1.msra.mxu0 0.0
    %470 = vmatprep.subr.mxu0 0.0
    %471 = vmatpush1.msra.mxu0 0.0
    %472 = vmatprep.subr.mxu0 0.0
    %473 = vmatpush1.msra.mxu0 0.0
    %474 = vmatprep.subr.mxu0 0.0
    %475 = vmatpush1.msra.mxu0 0.0
    %476 = vmatprep.subr.mxu0 0.0
    %477 = vmatpush1.msra.mxu0 0.0
    %478 = vmatprep.subr.mxu0 0.0
    %479 = vmatpush1.msra.mxu0 0.0
    %480 = vmatprep.subr.mxu0 0.0
    %481 = vmatpush1.msra.mxu0 0.0
    %482 = vmatprep.subr.mxu0 0.0
    %483 = vmatpush1.msra.mxu0 0.0
    %484 = vmatprep.subr.mxu0 0.0
    %485 = vmatpush1.msra.mxu0 0.0
    %486 = vmatprep.subr.mxu0 0.0
    %487 = vmatpush1.msra.mxu0 0.0
    %488 = vmatprep.subr.mxu0 0.0
    %489 = vmatpush1.msra.mxu0 0.0
    %490 = vmatprep.subr.mxu0 0.0
    %491 = vmatpush1.msra.mxu0 0.0
    %492 = vmatprep.subr.mxu0 0.0
    %493 = vmatpush1.msra.mxu0 0.0
    %494 = vmatprep.subr.mxu0 0.0
    %495 = vmatpush1.msra.mxu0 0.0
    %496 = vmatprep.subr.mxu0 0.0
    %497 = vmatpush1.msra.mxu0 0.0
    %498 = vmatprep.subr.mxu0 0.0
    %499 = vmatpush1.msra.mxu0 0.0
    %500 = vmatprep.subr.mxu0 0.0
    %501 = vmatpush1.msra.mxu0 0.0
    %502 = vmatprep.subr.mxu0 0.0
    %503 = vmatpush1.msra.mxu0 0.0
    %504 = vmatprep.subr.mxu0 0.0
    %505 = vmatpush1.msra.mxu0 0.0
    %506 = vmatprep.subr.mxu0 0.0
    %507 = vmatpush1.msra.mxu0 0.0
    %508 = vmatprep.subr.mxu0 0.0
    %509 = vmatpush1.msra.mxu0 0.0
    %510 = vmatprep.subr.mxu0 0.0
    %511 = vmatpush1.msra.mxu0 0.0
    %512 = vmatprep.mubr.f32.mxu0 0.0
    %513 = vmatmul.mubr.f32.gmra.mrb[0].mxu0 %v285
    %v514 = vpop.f32.mrb[0].mxu0
    %v515 = vadd.f32 0.0, %v514
    %v516 = vpop.f32.mrb[0].mxu0
    %517 = vmatprep.mubr.f32.mxu0 0.0
    %518 = vmatmul.mubr.f32.gmra.mrb[0].mxu0 %v288
    %v519 = vpop.f32.mrb[0].mxu0
    %v520 = vadd.f32 0.0, %v519
    %v521 = vpop.f32.mrb[0].mxu0
    %522 = vdwg.mxu0
    %v524 = vsel %vm236, %v357, 0
    %v527 = vsel %vm236, %v436, 0
    %529 = vmatprep.subr.mxu0 0.0
    %530 = vmatpush1.xpose.msra.mxu0 %v527
    %531 = vmatprep.subr.mxu0 0.0
    %532 = vmatpush1.xpose.msra.mxu0 0.0
    %533 = vmatprep.subr.mxu0 0.0
    %534 = vmatpush1.xpose.msra.mxu0 0.0
    %535 = vmatprep.subr.mxu0 0.0
    %536 = vmatpush1.xpose.msra.mxu0 0.0
    %537 = vmatprep.subr.mxu0 0.0
    %538 = vmatpush1.xpose.msra.mxu0 0.0
    %539 = vmatprep.subr.mxu0 0.0
    %540 = vmatpush1.xpose.msra.mxu0 0.0
    %541 = vmatprep.subr.mxu0 0.0
    %542 = vmatpush1.xpose.msra.mxu0 0.0
    %543 = vmatprep.subr.mxu0 0.0
    %544 = vmatpush1.xpose.msra.mxu0 0.0
    %545 = vmatprep.subr.mxu0 0.0
    %546 = vmatpush1.xpose.msra.mxu0 0.0
    %547 = vmatprep.subr.mxu0 0.0
    %548 = vmatpush1.xpose.msra.mxu0 0.0
    %549 = vmatprep.subr.mxu0 0.0
    %550 = vmatpush1.xpose.msra.mxu0 0.0
    %551 = vmatprep.subr.mxu0 0.0
    %552 = vmatpush1.xpose.msra.mxu0 0.0
    %553 = vmatprep.subr.mxu0 0.0
    %554 = vmatpush1.xpose.msra.mxu0 0.0
    %555 = vmatprep.subr.mxu0 0.0
    %556 = vmatpush1.xpose.msra.mxu0 0.0
    %557 = vmatprep.subr.mxu0 0.0
    %558 = vmatpush1.xpose.msra.mxu0 0.0
    %559 = vmatprep.subr.mxu0 0.0
    %560 = vmatpush1.xpose.msra.mxu0 0.0
    %561 = vmatprep.subr.mxu0 0.0
    %562 = vmatpush1.xpose.msra.mxu0 0.0
    %563 = vmatprep.subr.mxu0 0.0
    %564 = vmatpush1.xpose.msra.mxu0 0.0
    %565 = vmatprep.subr.mxu0 0.0
    %566 = vmatpush1.xpose.msra.mxu0 0.0
    %567 = vmatprep.subr.mxu0 0.0
    %568 = vmatpush1.xpose.msra.mxu0 0.0
    %569 = vmatprep.subr.mxu0 0.0
    %570 = vmatpush1.xpose.msra.mxu0 0.0
    %571 = vmatprep.subr.mxu0 0.0
    %572 = vmatpush1.xpose.msra.mxu0 0.0
    %573 = vmatprep.subr.mxu0 0.0
    %574 = vmatpush1.xpose.msra.mxu0 0.0
    %575 = vmatprep.subr.mxu0 0.0
    %576 = vmatpush1.xpose.msra.mxu0 0.0
    %577 = vmatprep.subr.mxu0 0.0
    %578 = vmatpush1.xpose.msra.mxu0 0.0
    %579 = vmatprep.subr.mxu0 0.0
    %580 = vmatpush1.xpose.msra.mxu0 0.0
    %581 = vmatprep.subr.mxu0 0.0
    %582 = vmatpush1.xpose.msra.mxu0 0.0
    %583 = vmatprep.subr.mxu0 0.0
    %584 = vmatpush1.xpose.msra.mxu0 0.0
    %585 = vmatprep.subr.mxu0 0.0
    %586 = vmatpush1.xpose.msra.mxu0 0.0
    %587 = vmatprep.subr.mxu0 0.0
    %588 = vmatpush1.xpose.msra.mxu0 0.0
    %589 = vmatprep.subr.mxu0 0.0
    %590 = vmatpush1.xpose.msra.mxu0 0.0
    %591 = vmatprep.subr.mxu0 0.0
    %592 = vmatpush1.xpose.msra.mxu0 0.0
    %593 = vmatprep.mubr.f32.mxu0 0.0
    %594 = vmatmul.mubr.f32.gmra.mrb[0].mxu0 %v524
    %v595 = vpop.f32.mrb[0].mxu0
    %v596 = vadd.f32 %v99, %v595
    %v597 = vpop.f32.mrb[0].mxu0
    %598 = vdwg.mxu0
    %v600 = vsel %vm236, %v362, 0
    %v603 = vsel %vm236, %v441, 0
    %605 = vmatprep.subr.mxu0 0.0
    %606 = vmatpush1.xpose.msra.mxu0 %v603
    %607 = vmatprep.subr.mxu0 0.0
    %608 = vmatpush1.xpose.msra.mxu0 0.0
    %609 = vmatprep.subr.mxu0 0.0
    %610 = vmatpush1.xpose.msra.mxu0 0.0
    %611 = vmatprep.subr.mxu0 0.0
    %612 = vmatpush1.xpose.msra.mxu0 0.0
    %613 = vmatprep.subr.mxu0 0.0
    %614 = vmatpush1.xpose.msra.mxu0 0.0
    %615 = vmatprep.subr.mxu0 0.0
    %616 = vmatpush1.xpose.msra.mxu0 0.0
    %617 = vmatprep.subr.mxu0 0.0
    %618 = vmatpush1.xpose.msra.mxu0 0.0
    %619 = vmatprep.subr.mxu0 0.0
    %620 = vmatpush1.xpose.msra.mxu0 0.0
    %621 = vmatprep.subr.mxu0 0.0
    %622 = vmatpush1.xpose.msra.mxu0 0.0
    %623 = vmatprep.subr.mxu0 0.0
    %624 = vmatpush1.xpose.msra.mxu0 0.0
    %625 = vmatprep.subr.mxu0 0.0
    %626 = vmatpush1.xpose.msra.mxu0 0.0
    %627 = vmatprep.subr.mxu0 0.0
    %628 = vmatpush1.xpose.msra.mxu0 0.0
    %629 = vmatprep.subr.mxu0 0.0
    %630 = vmatpush1.xpose.msra.mxu0 0.0
    %631 = vmatprep.subr.mxu0 0.0
    %632 = vmatpush1.xpose.msra.mxu0 0.0
    %633 = vmatprep.subr.mxu0 0.0
    %634 = vmatpush1.xpose.msra.mxu0 0.0
    %635 = vmatprep.subr.mxu0 0.0
    %636 = vmatpush1.xpose.msra.mxu0 0.0
    %637 = vmatprep.subr.mxu0 0.0
    %638 = vmatpush1.xpose.msra.mxu0 0.0
    %639 = vmatprep.subr.mxu0 0.0
    %640 = vmatpush1.xpose.msra.mxu0 0.0
    %641 = vmatprep.subr.mxu0 0.0
    %642 = vmatpush1.xpose.msra.mxu0 0.0
    %643 = vmatprep.subr.mxu0 0.0
    %644 = vmatpush1.xpose.msra.mxu0 0.0
    %645 = vmatprep.subr.mxu0 0.0
    %646 = vmatpush1.xpose.msra.mxu0 0.0
    %647 = vmatprep.subr.mxu0 0.0
    %648 = vmatpush1.xpose.msra.mxu0 0.0
    %649 = vmatprep.subr.mxu0 0.0
    %650 = vmatpush1.xpose.msra.mxu0 0.0
    %651 = vmatprep.subr.mxu0 0.0
    %652 = vmatpush1.xpose.msra.mxu0 0.0
    %653 = vmatprep.subr.mxu0 0.0
    %654 = vmatpush1.xpose.msra.mxu0 0.0
    %655 = vmatprep.subr.mxu0 0.0
    %656 = vmatpush1.xpose.msra.mxu0 0.0
    %657 = vmatprep.subr.mxu0 0.0
    %658 = vmatpush1.xpose.msra.mxu0 0.0
    %659 = vmatprep.subr.mxu0 0.0
    %660 = vmatpush1.xpose.msra.mxu0 0.0
    %661 = vmatprep.subr.mxu0 0.0
    %662 = vmatpush1.xpose.msra.mxu0 0.0
    %663 = vmatprep.subr.mxu0 0.0
    %664 = vmatpush1.xpose.msra.mxu0 0.0
    %665 = vmatprep.subr.mxu0 0.0
    %666 = vmatpush1.xpose.msra.mxu0 0.0
    %667 = vmatprep.subr.mxu0 0.0
    %668 = vmatpush1.xpose.msra.mxu0 0.0
    %669 = vmatprep.mubr.f32.mxu0 0.0
    %670 = vmatmul.mubr.f32.gmra.mrb[0].mxu0 %v600
    %v671 = vpop.f32.mrb[0].mxu0
    %v672 = vadd.f32 %v100, %v671
    %v673 = vpop.f32.mrb[0].mxu0
    %674 = vdwg.mxu0
    %vm675 = vcmask 64512
    %v676 = vsel %vm675, %v596, -inf
    %677 = vmax.xlane.f32.xlu0 %v676
    %v678 = vpop.xlane.xlu0 %677
    %v679 = vsel %vm675, %v672, -inf
    %680 = vmax.xlane.f32.xlu0 %v679
    %v681 = vpop.xlane.xlu0 %680
    %v682 = vsub.f32 %v596, %v678
    %v683 = vsub.f32 %v672, %v681
    %v684 = vmul.f32 %v682, 1.442695
    %v685 = vpow.pop %v684
    %v686 = vmul.f32 %v683, 1.442695
    %v687 = vpow.pop %v686
    %v688 = vsel %vm675, %v685, 0.0
    %689 = vadd.xlane.f32.xlu0 %v688
    %v690 = vpop.xlane.xlu0 %689
    %v691 = vsel %vm675, %v687, 0.0
    %692 = vadd.xlane.f32.xlu0 %v691
    %v693 = vpop.xlane.xlu0 %692
    %v694 = vrcp.pop %v690
    %v695 = vrcp.pop %v693
    %v696 = vmul.f32 %v685, %v694
    %v697 = vmul.f32 %v687, %v695
    %v699 = vsel %vm675, %v696, 0
    %701 = vmatprep.subr.mxu0 0.0
    %702 = vmatpush1.msra.mxu0 %v515
    %703 = vmatprep.subr.mxu0 0.0
    %704 = vmatpush1.msra.mxu0 0.0
    %705 = vmatprep.subr.mxu0 0.0
    %706 = vmatpush1.msra.mxu0 0.0
    %707 = vmatprep.subr.mxu0 0.0
    %708 = vmatpush1.msra.mxu0 0.0
    %709 = vmatprep.subr.mxu0 0.0
    %710 = vmatpush1.msra.mxu0 0.0
    %711 = vmatprep.subr.mxu0 0.0
    %712 = vmatpush1.msra.mxu0 0.0
    %713 = vmatprep.subr.mxu0 0.0
    %714 = vmatpush1.msra.mxu0 0.0
    %715 = vmatprep.subr.mxu0 0.0
    %716 = vmatpush1.msra.mxu0 0.0
    %717 = vmatprep.subr.mxu0 0.0
    %718 = vmatpush1.msra.mxu0 0.0
    %719 = vmatprep.subr.mxu0 0.0
    %720 = vmatpush1.msra.mxu0 0.0
    %721 = vmatprep.subr.mxu0 0.0
    %722 = vmatpush1.msra.mxu0 0.0
    %723 = vmatprep.subr.mxu0 0.0
    %724 = vmatpush1.msra.mxu0 0.0
    %725 = vmatprep.subr.mxu0 0.0
    %726 = vmatpush1.msra.mxu0 0.0
    %727 = vmatprep.subr.mxu0 0.0
    %728 = vmatpush1.msra.mxu0 0.0
    %729 = vmatprep.subr.mxu0 0.0
    %730 = vmatpush1.msra.mxu0 0.0
    %731 = vmatprep.subr.mxu0 0.0
    %732 = vmatpush1.msra.mxu0 0.0
    %733 = vmatprep.subr.mxu0 0.0
    %734 = vmatpush1.msra.mxu0 0.0
    %735 = vmatprep.subr.mxu0 0.0
    %736 = vmatpush1.msra.mxu0 0.0
    %737 = vmatprep.subr.mxu0 0.0
    %738 = vmatpush1.msra.mxu0 0.0
    %739 = vmatprep.subr.mxu0 0.0
    %740 = vmatpush1.msra.mxu0 0.0
    %741 = vmatprep.subr.mxu0 0.0
    %742 = vmatpush1.msra.mxu0 0.0
    %743 = vmatprep.subr.mxu0 0.0
    %744 = vmatpush1.msra.mxu0 0.0
    %745 = vmatprep.subr.mxu0 0.0
    %746 = vmatpush1.msra.mxu0 0.0
    %747 = vmatprep.subr.mxu0 0.0
    %748 = vmatpush1.msra.mxu0 0.0
    %749 = vmatprep.subr.mxu0 0.0
    %750 = vmatpush1.msra.mxu0 0.0
    %751 = vmatprep.subr.mxu0 0.0
    %752 = vmatpush1.msra.mxu0 0.0
    %753 = vmatprep.subr.mxu0 0.0
    %754 = vmatpush1.msra.mxu0 0.0
    %755 = vmatprep.subr.mxu0 0.0
    %756 = vmatpush1.msra.mxu0 0.0
    %757 = vmatprep.subr.mxu0 0.0
    %758 = vmatpush1.msra.mxu0 0.0
    %759 = vmatprep.subr.mxu0 0.0
    %760 = vmatpush1.msra.mxu0 0.0
    %761 = vmatprep.subr.mxu0 0.0
    %762 = vmatpush1.msra.mxu0 0.0
    %763 = vmatprep.subr.mxu0 0.0
    %764 = vmatpush1.msra.mxu0 0.0
    %765 = vmatprep.mubr.f32.mxu0 0.0
    %766 = vmatmul.mubr.f32.gmra.mrb[0].mxu0 %v699
    %v767 = vpop.f32.mrb[0].mxu0
    %v768 = vadd.f32 0.0, %v767
    %v769 = vpop.f32.mrb[0].mxu0
    %770 = vdwg.mxu0
    %v772 = vsel %vm675, %v697, 0
    %774 = vmatprep.subr.mxu0 0.0
    %775 = vmatpush1.msra.mxu0 %v520
    %776 = vmatprep.subr.mxu0 0.0
    %777 = vmatpush1.msra.mxu0 0.0
    %778 = vmatprep.subr.mxu0 0.0
    %779 = vmatpush1.msra.mxu0 0.0
    %780 = vmatprep.subr.mxu0 0.0
    %781 = vmatpush1.msra.mxu0 0.0
    %782 = vmatprep.subr.mxu0 0.0
    %783 = vmatpush1.msra.mxu0 0.0
    %784 = vmatprep.subr.mxu0 0.0
    %785 = vmatpush1.msra.mxu0 0.0
    %786 = vmatprep.subr.mxu0 0.0
    %787 = vmatpush1.msra.mxu0 0.0
    %788 = vmatprep.subr.mxu0 0.0
    %789 = vmatpush1.msra.mxu0 0.0
    %790 = vmatprep.subr.mxu0 0.0
    %791 = vmatpush1.msra.mxu0 0.0
    %792 = vmatprep.subr.mxu0 0.0
    %793 = vmatpush1.msra.mxu0 0.0
    %794 = vmatprep.subr.mxu0 0.0
    %795 = vmatpush1.msra.mxu0 0.0
    %796 = vmatprep.subr.mxu0 0.0
    %797 = vmatpush1.msra.mxu0 0.0
    %798 = vmatprep.subr.mxu0 0.0
    %799 = vmatpush1.msra.mxu0 0.0
    %800 = vmatprep.subr.mxu0 0.0
    %801 = vmatpush1.msra.mxu0 0.0
    %802 = vmatprep.subr.mxu0 0.0
    %803 = vmatpush1.msra.mxu0 0.0
    %804 = vmatprep.subr.mxu0 0.0
    %805 = vmatpush1.msra.mxu0 0.0
    %806 = vmatprep.subr.mxu0 0.0
    %807 = vmatpush1.msra.mxu0 0.0
    %808 = vmatprep.subr.mxu0 0.0
    %809 = vmatpush1.msra.mxu0 0.0
    %810 = vmatprep.subr.mxu0 0.0
    %811 = vmatpush1.msra.mxu0 0.0
    %812 = vmatprep.subr.mxu0 0.0
    %813 = vmatpush1.msra.mxu0 0.0
    %814 = vmatprep.subr.mxu0 0.0
    %815 = vmatpush1.msra.mxu0 0.0
    %816 = vmatprep.subr.mxu0 0.0
    %817 = vmatpush1.msra.mxu0 0.0
    %818 = vmatprep.subr.mxu0 0.0
    %819 = vmatpush1.msra.mxu0 0.0
    %820 = vmatprep.subr.mxu0 0.0
    %821 = vmatpush1.msra.mxu0 0.0
    %822 = vmatprep.subr.mxu0 0.0
    %823 = vmatpush1.msra.mxu0 0.0
    %824 = vmatprep.subr.mxu0 0.0
    %825 = vmatpush1.msra.mxu0 0.0
    %826 = vmatprep.subr.mxu0 0.0
    %827 = vmatpush1.msra.mxu0 0.0
    %828 = vmatprep.subr.mxu0 0.0
    %829 = vmatpush1.msra.mxu0 0.0
    %830 = vmatprep.subr.mxu0 0.0
    %831 = vmatpush1.msra.mxu0 0.0
    %832 = vmatprep.subr.mxu0 0.0
    %833 = vmatpush1.msra.mxu0 0.0
    %834 = vmatprep.subr.mxu0 0.0
    %835 = vmatpush1.msra.mxu0 0.0
    %836 = vmatprep.subr.mxu0 0.0
    %837 = vmatpush1.msra.mxu0 0.0
    %838 = vmatprep.mubr.f32.mxu0 0.0
    %839 = vmatmul.mubr.f32.gmra.mrb[0].mxu0 %v772
    %v840 = vpop.f32.mrb[0].mxu0
    %v841 = vadd.f32 0.0, %v840
    %v842 = vpop.f32.mrb[0].mxu0
    %843 = vdwg.mxu0
    %v844 = vld [vmem:[%s11] sm:$0xff]
    %v845 = vld [vmem:[%s11 + $0x8] sm:$0xff]
    %v846 = vld [vmem:[%s11 + $0x10] sm:$0xff]
    %v847 = vld [vmem:[%s11 + $0x18] sm:$0xff]
    %v849 = vsel %vm236, %v768, 0
    %v852 = vsel %vm236, %v841, 0
    %854 = vmatprep.subr.mxu0 0.0
    %855 = vmatpush1.msra.mxu0 %v844
    %856 = vmatprep.subr.mxu0 0.0
    %857 = vmatpush1.msra.mxu0 %v845
    %858 = vmatprep.subr.mxu0 0.0
    %859 = vmatpush1.msra.mxu0 %v846
    %860 = vmatprep.subr.mxu0 0.0
    %861 = vmatpush1.msra.mxu0 %v847
    %862 = vmatprep.subr.mxu0 0.0
    %863 = vmatpush1.msra.mxu0 0.0
    %864 = vmatprep.subr.mxu0 0.0
    %865 = vmatpush1.msra.mxu0 0.0
    %866 = vmatprep.subr.mxu0 0.0
    %867 = vmatpush1.msra.mxu0 0.0
    %868 = vmatprep.subr.mxu0 0.0
    %869 = vmatpush1.msra.mxu0 0.0
    %870 = vmatprep.subr.mxu0 0.0
    %871 = vmatpush1.msra.mxu0 0.0
    %872 = vmatprep.subr.mxu0 0.0
    %873 = vmatpush1.msra.mxu0 0.0
    %874 = vmatprep.subr.mxu0 0.0
    %875 = vmatpush1.msra.mxu0 0.0
    %876 = vmatprep.subr.mxu0 0.0
    %877 = vmatpush1.msra.mxu0 0.0
    %878 = vmatprep.subr.mxu0 0.0
    %879 = vmatpush1.msra.mxu0 0.0
    %880 = vmatprep.subr.mxu0 0.0
    %881 = vmatpush1.msra.mxu0 0.0
    %882 = vmatprep.subr.mxu0 0.0
    %883 = vmatpush1.msra.mxu0 0.0
    %884 = vmatprep.subr.mxu0 0.0
    %885 = vmatpush1.msra.mxu0 0.0
    %886 = vmatprep.subr.mxu0 0.0
    %887 = vmatpush1.msra.mxu0 0.0
    %888 = vmatprep.subr.mxu0 0.0
    %889 = vmatpush1.msra.mxu0 0.0
    %890 = vmatprep.subr.mxu0 0.0
    %891 = vmatpush1.msra.mxu0 0.0
    %892 = vmatprep.subr.mxu0 0.0
    %893 = vmatpush1.msra.mxu0 0.0
    %894 = vmatprep.subr.mxu0 0.0
    %895 = vmatpush1.msra.mxu0 0.0
    %896 = vmatprep.subr.mxu0 0.0
    %897 = vmatpush1.msra.mxu0 0.0
    %898 = vmatprep.subr.mxu0 0.0
    %899 = vmatpush1.msra.mxu0 0.0
    %900 = vmatprep.subr.mxu0 0.0
    %901 = vmatpush1.msra.mxu0 0.0
    %902 = vmatprep.subr.mxu0 0.0
    %903 = vmatpush1.msra.mxu0 0.0
    %904 = vmatprep.subr.mxu0 0.0
    %905 = vmatpush1.msra.mxu0 0.0
    %906 = vmatprep.subr.mxu0 0.0
    %907 = vmatpush1.msra.mxu0 0.0
    %908 = vmatprep.subr.mxu0 0.0
    %909 = vmatpush1.msra.mxu0 0.0
    %910 = vmatprep.subr.mxu0 0.0
    %911 = vmatpush1.msra.mxu0 0.0
    %912 = vmatprep.subr.mxu0 0.0
    %913 = vmatpush1.msra.mxu0 0.0
    %914 = vmatprep.subr.mxu0 0.0
    %915 = vmatpush1.msra.mxu0 0.0
    %916 = vmatprep.subr.mxu0 0.0
    %917 = vmatpush1.msra.mxu0 0.0
    %918 = vmatprep.mubr.f32.mxu0 0.0
    %919 = vmatmul.mubr.f32.gmra.mrb[0].mxu0 %v849
    %v920 = vpop.f32.mrb[0].mxu0
    %v921 = vadd.f32 0.0, %v920
    %v922 = vpop.f32.mrb[0].mxu0
    %923 = vmatprep.mubr.f32.mxu0 0.0
    %924 = vmatmul.mubr.f32.gmra.mrb[0].mxu0 %v852
    %v925 = vpop.f32.mrb[0].mxu0
    %v926 = vadd.f32 0.0, %v925
    %v927 = vpop.f32.mrb[0].mxu0
    %928 = vdwg.mxu0
    %v929 = vadd.f32 %v278, %v921
    %v930 = vadd.f32 %v279, %v926
    %v931 = vld [vmem:[%s12] sm:$0x1]
    %v932 = vld [vmem:[%s13] sm:$0x1]
    %v933 = vsel %vm236, %v929, 0.0
    %934 = vadd.xlane.f32.xlu0 %v933
    %v935 = vpop.xlane.xlu0 %934
    %v936 = vsel %vm236, %v930, 0.0
    %937 = vadd.xlane.f32.xlu0 %v936
    %v938 = vpop.xlane.xlu0 %937
    %v939 = vmul.f32 %v935, %v243
    %v940 = vmul.f32 %v938, %v243
    %v941 = vsub.f32 %v929, %v939
    %v942 = vsub.f32 %v930, %v940
    %v943 = vmul.f32 %v941, %v941
    %v944 = vmul.f32 %v942, %v942
    %v945 = vsel %vm236, %v943, 0.0
    %946 = vadd.xlane.f32.xlu0 %v945
    %v947 = vpop.xlane.xlu0 %946
    %v948 = vsel %vm236, %v944, 0.0
    %949 = vadd.xlane.f32.xlu0 %v948
    %v950 = vpop.xlane.xlu0 %949
    %v951 = vmul.f32 %v947, %v243
    %v952 = vmul.f32 %v950, %v243
    %v953 = vadd.f32 %v951, 1e-12
    %v954 = vadd.f32 %v952, 1e-12
    %v955 = vrsqrt.pop %v953
    %v956 = vrsqrt.pop %v954
    %v957 = vmul.f32 %v941, %v955
    %v958 = vmul.f32 %v942, %v956
    %v960 = vlaneseq
    %v961 = vshrl.u32 %v960, 7
    %v962 = vsub.s32 0, %v961
    %v963 = vrot.slane %v931, %v962
    %v965 = vmul.f32 %v957, %v963
    %v966 = vmul.f32 %v958, %v963
    %v968 = vlaneseq
    %v969 = vshrl.u32 %v968, 7
    %v970 = vsub.s32 0, %v969
    %v971 = vrot.slane %v932, %v970
    %v973 = vadd.f32 %v965, %v971
    %v974 = vadd.f32 %v966, %v971
    %v975 = vld [vmem:[%s14] sm:$0xff]
    %v976 = vld [vmem:[%s14 + $0x8] sm:$0xff]
    %v977 = vld [vmem:[%s14 + $0x10] sm:$0xff]
    %v978 = vld [vmem:[%s14 + $0x18] sm:$0xff]
    %v979 = vld [vmem:[%s15] sm:$0x1]
    %v981 = vlaneseq
    %v982 = vshrl.u32 %v981, 7
    %v983 = vsub.s32 0, %v982
    %v984 = vrot.slane %v979, %v983
    %v987 = vsel %vm236, %v973, 0
    %v990 = vsel %vm236, %v974, 0
    %992 = vmatprep.subr.mxu0 0.0
    %993 = vmatpush1.msra.mxu0 %v975
    %994 = vmatprep.subr.mxu0 0.0
    %995 = vmatpush1.msra.mxu0 %v976
    %996 = vmatprep.subr.mxu0 0.0
    %997 = vmatpush1.msra.mxu0 %v977
    %998 = vmatprep.subr.mxu0 0.0
    %999 = vmatpush1.msra.mxu0 %v978
    %1000 = vmatprep.subr.mxu0 0.0
    %1001 = vmatpush1.msra.mxu0 0.0
    %1002 = vmatprep.subr.mxu0 0.0
    %1003 = vmatpush1.msra.mxu0 0.0
    %1004 = vmatprep.subr.mxu0 0.0
    %1005 = vmatpush1.msra.mxu0 0.0
    %1006 = vmatprep.subr.mxu0 0.0
    %1007 = vmatpush1.msra.mxu0 0.0
    %1008 = vmatprep.subr.mxu0 0.0
    %1009 = vmatpush1.msra.mxu0 0.0
    %1010 = vmatprep.subr.mxu0 0.0
    %1011 = vmatpush1.msra.mxu0 0.0
    %1012 = vmatprep.subr.mxu0 0.0
    %1013 = vmatpush1.msra.mxu0 0.0
    %1014 = vmatprep.subr.mxu0 0.0
    %1015 = vmatpush1.msra.mxu0 0.0
    %1016 = vmatprep.subr.mxu0 0.0
    %1017 = vmatpush1.msra.mxu0 0.0
    %1018 = vmatprep.subr.mxu0 0.0
    %1019 = vmatpush1.msra.mxu0 0.0
    %1020 = vmatprep.subr.mxu0 0.0
    %1021 = vmatpush1.msra.mxu0 0.0
    %1022 = vmatprep.subr.mxu0 0.0
    %1023 = vmatpush1.msra.mxu0 0.0
    %1024 = vmatprep.subr.mxu0 0.0
    %1025 = vmatpush1.msra.mxu0 0.0
    %1026 = vmatprep.subr.mxu0 0.0
    %1027 = vmatpush1.msra.mxu0 0.0
    %1028 = vmatprep.subr.mxu0 0.0
    %1029 = vmatpush1.msra.mxu0 0.0
    %1030 = vmatprep.subr.mxu0 0.0
    %1031 = vmatpush1.msra.mxu0 0.0
    %1032 = vmatprep.subr.mxu0 0.0
    %1033 = vmatpush1.msra.mxu0 0.0
    %1034 = vmatprep.subr.mxu0 0.0
    %1035 = vmatpush1.msra.mxu0 0.0
    %1036 = vmatprep.subr.mxu0 0.0
    %1037 = vmatpush1.msra.mxu0 0.0
    %1038 = vmatprep.subr.mxu0 0.0
    %1039 = vmatpush1.msra.mxu0 0.0
    %1040 = vmatprep.subr.mxu0 0.0
    %1041 = vmatpush1.msra.mxu0 0.0
    %1042 = vmatprep.subr.mxu0 0.0
    %1043 = vmatpush1.msra.mxu0 0.0
    %1044 = vmatprep.subr.mxu0 0.0
    %1045 = vmatpush1.msra.mxu0 0.0
    %1046 = vmatprep.subr.mxu0 0.0
    %1047 = vmatpush1.msra.mxu0 0.0
    %1048 = vmatprep.subr.mxu0 0.0
    %1049 = vmatpush1.msra.mxu0 0.0
    %1050 = vmatprep.subr.mxu0 0.0
    %1051 = vmatpush1.msra.mxu0 0.0
    %1052 = vmatprep.subr.mxu0 0.0
    %1053 = vmatpush1.msra.mxu0 0.0
    %1054 = vmatprep.subr.mxu0 0.0
    %1055 = vmatpush1.msra.mxu0 0.0
    %1056 = vmatprep.mubr.f32.mxu0 0.0
    %1057 = vmatmul.mubr.f32.gmra.mrb[0].mxu0 %v987
    %v1058 = vpop.f32.mrb[0].mxu0
    %v1059 = vadd.f32 %v984, %v1058
    %v1060 = vpop.f32.mrb[0].mxu0
    %1061 = vmatprep.mubr.f32.mxu0 0.0
    %1062 = vmatmul.mubr.f32.gmra.mrb[0].mxu0 %v990
    %v1063 = vpop.f32.mrb[0].mxu0
    %v1064 = vadd.f32 %v984, %v1063
    %v1065 = vpop.f32.mrb[0].mxu0
    %1066 = vdwg.mxu0
    %v1067 = vmul.f32 %v1059, 0.5
    %v1068 = vmul.f32 %v1064, 0.5
    %v1069 = vmul.f32 %v1059, 0.044715
    %v1070 = vmul.f32 %v1064, 0.044715
    %v1071 = vmul.f32 %v1069, %v1059
    %v1072 = vmul.f32 %v1070, %v1064
    %v1073 = vmul.f32 %v1071, %v1059
    %v1074 = vmul.f32 %v1072, %v1064
    %v1075 = vadd.f32 %v1059, %v1073
    %v1076 = vadd.f32 %v1064, %v1074
    %v1077 = vmul.f32 %v1075, 0.7978846
    %v1078 = vmul.f32 %v1076, 0.7978846
    %v1079 = vtanh.pop %v1077
    %v1080 = vtanh.pop %v1078
    %v1081 = vadd.f32 %v1079, 1.0
    %v1082 = vadd.f32 %v1080, 1.0
    %v1083 = vmul.f32 %v1067, %v1081
    %v1084 = vmul.f32 %v1068, %v1082
    %v1085 = vld [vmem:[%s16] sm:$0xff]
    %v1086 = vld [vmem:[%s16 + $0x8] sm:$0xff]
    %v1087 = vld [vmem:[%s16 + $0x10] sm:$0xff]
    %v1088 = vld [vmem:[%s16 + $0x18] sm:$0xff]
    %v1089 = vld [vmem:[%s16 + $0x20] sm:$0xff]
    %v1090 = vld [vmem:[%s16 + $0x28] sm:$0xff]
    %v1091 = vld [vmem:[%s16 + $0x30] sm:$0xff]
    %v1092 = vld [vmem:[%s16 + $0x38] sm:$0xff]
    %v1093 = vld [vmem:[%s16 + $0x40] sm:$0xff]
    %v1094 = vld [vmem:[%s16 + $0x48] sm:$0xff]
    %v1095 = vld [vmem:[%s16 + $0x50] sm:$0xff]
    %v1096 = vld [vmem:[%s16 + $0x58] sm:$0xff]
    %v1097 = vld [vmem:[%s16 + $0x60] sm:$0xff]
    %v1098 = vld [vmem:[%s16 + $0x68] sm:$0xff]
    %v1099 = vld [vmem:[%s16 + $0x70] sm:$0xff]
    %v1100 = vld [vmem:[%s16 + $0x78] sm:$0xff]
    %v1101 = vld [vmem:[%s17] sm:$0x1]
    %v1103 = vlaneseq
    %v1104 = vshrl.u32 %v1103, 7
    %v1105 = vsub.s32 0, %v1104
    %v1106 = vrot.slane %v1101, %v1105
    %1108 = vmatprep.subr.mxu0 0.0
    %1109 = vmatpush1.msra.mxu0 %v1085
    %1110 = vmatprep.subr.mxu0 0.0
    %1111 = vmatpush1.msra.mxu0 %v1086
    %1112 = vmatprep.subr.mxu0 0.0
    %1113 = vmatpush1.msra.mxu0 %v1087
    %1114 = vmatprep.subr.mxu0 0.0
    %1115 = vmatpush1.msra.mxu0 %v1088
    %1116 = vmatprep.subr.mxu0 0.0
    %1117 = vmatpush1.msra.mxu0 %v1089
    %1118 = vmatprep.subr.mxu0 0.0
    %1119 = vmatpush1.msra.mxu0 %v1090
    %1120 = vmatprep.subr.mxu0 0.0
    %1121 = vmatpush1.msra.mxu0 %v1091
    %1122 = vmatprep.subr.mxu0 0.0
    %1123 = vmatpush1.msra.mxu0 %v1092
    %1124 = vmatprep.subr.mxu0 0.0
    %1125 = vmatpush1.msra.mxu0 %v1093
    %1126 = vmatprep.subr.mxu0 0.0
    %1127 = vmatpush1.msra.mxu0 %v1094
    %1128 = vmatprep.subr.mxu0 0.0
    %1129 = vmatpush1.msra.mxu0 %v1095
    %1130 = vmatprep.subr.mxu0 0.0
    %1131 = vmatpush1.msra.mxu0 %v1096
    %1132 = vmatprep.subr.mxu0 0.0
    %1133 = vmatpush1.msra.mxu0 %v1097
    %1134 = vmatprep.subr.mxu0 0.0
    %1135 = vmatpush1.msra.mxu0 %v1098
    %1136 = vmatprep.subr.mxu0 0.0
    %1137 = vmatpush1.msra.mxu0 %v1099
    %1138 = vmatprep.subr.mxu0 0.0
    %1139 = vmatpush1.msra.mxu0 %v1100
    %1140 = vmatprep.subr.mxu0 0.0
    %1141 = vmatpush1.msra.mxu0 0.0
    %1142 = vmatprep.subr.mxu0 0.0
    %1143 = vmatpush1.msra.mxu0 0.0
    %1144 = vmatprep.subr.mxu0 0.0
    %1145 = vmatpush1.msra.mxu0 0.0
    %1146 = vmatprep.subr.mxu0 0.0
    %1147 = vmatpush1.msra.mxu0 0.0
    %1148 = vmatprep.subr.mxu0 0.0
    %1149 = vmatpush1.msra.mxu0 0.0
    %1150 = vmatprep.subr.mxu0 0.0
    %1151 = vmatpush1.msra.mxu0 0.0
    %1152 = vmatprep.subr.mxu0 0.0
    %1153 = vmatpush1.msra.mxu0 0.0
    %1154 = vmatprep.subr.mxu0 0.0
    %1155 = vmatpush1.msra.mxu0 0.0
    %1156 = vmatprep.subr.mxu0 0.0
    %1157 = vmatpush1.msra.mxu0 0.0
    %1158 = vmatprep.subr.mxu0 0.0
    %1159 = vmatpush1.msra.mxu0 0.0
    %1160 = vmatprep.subr.mxu0 0.0
    %1161 = vmatpush1.msra.mxu0 0.0
    %1162 = vmatprep.subr.mxu0 0.0
    %1163 = vmatpush1.msra.mxu0 0.0
    %1164 = vmatprep.subr.mxu0 0.0
    %1165 = vmatpush1.msra.mxu0 0.0
    %1166 = vmatprep.subr.mxu0 0.0
    %1167 = vmatpush1.msra.mxu0 0.0
    %1168 = vmatprep.subr.mxu0 0.0
    %1169 = vmatpush1.msra.mxu0 0.0
    %1170 = vmatprep.subr.mxu0 0.0
    %1171 = vmatpush1.msra.mxu0 0.0
    %1172 = vmatprep.mubr.f32.mxu0 0.0
    %1173 = vmatmul.mubr.f32.gmra.mrb[0].mxu0 %v1083
    %v1174 = vpop.f32.mrb[0].mxu0
    %v1175 = vadd.f32 %v1106, %v1174
    %v1176 = vpop.f32.mrb[0].mxu0
    %1177 = vmatprep.mubr.f32.mxu0 0.0
    %1178 = vmatmul.mubr.f32.gmra.mrb[0].mxu0 %v1084
    %v1179 = vpop.f32.mrb[0].mxu0
    %v1180 = vadd.f32 %v1106, %v1179
    %v1181 = vpop.f32.mrb[0].mxu0
    %1182 = vdwg.mxu0
    %v1183 = vadd.f32 %v973, %v1175
    %v1184 = vadd.f32 %v974, %v1180
    %v1185 = vld [vmem:[%s18] sm:$0x1]
    %v1186 = vld [vmem:[%s19] sm:$0x1]
    %v1187 = vsel %vm236, %v1183, 0.0
    %1188 = vadd.xlane.f32.xlu0 %v1187
    %v1189 = vpop.xlane.xlu0 %1188
    %v1190 = vsel %vm236, %v1184, 0.0
    %1191 = vadd.xlane.f32.xlu0 %v1190
    %v1192 = vpop.xlane.xlu0 %1191
    %v1193 = vmul.f32 %v1189, %v243
    %v1194 = vmul.f32 %v1192, %v243
    %v1195 = vsub.f32 %v1183, %v1193
    %v1196 = vsub.f32 %v1184, %v1194
    %v1197 = vmul.f32 %v1195, %v1195
    %v1198 = vmul.f32 %v1196, %v1196
    %v1199 = vsel %vm236, %v1197, 0.0
    %1200 = vadd.xlane.f32.xlu0 %v1199
    %v1201 = vpop.xlane.xlu0 %1200
    %v1202 = vsel %vm236, %v1198, 0.0
    %1203 = vadd.xlane.f32.xlu0 %v1202
    %v1204 = vpop.xlane.xlu0 %1203
    %v1205 = vmul.f32 %v1201, %v243
    %v1206 = vmul.f32 %v1204, %v243
    %v1207 = vadd.f32 %v1205, 1e-12
    %v1208 = vadd.f32 %v1206, 1e-12
    %v1209 = vrsqrt.pop %v1207
    %v1210 = vrsqrt.pop %v1208
    %v1211 = vmul.f32 %v1195, %v1209
    %v1212 = vmul.f32 %v1196, %v1210
    %v1214 = vlaneseq
    %v1215 = vshrl.u32 %v1214, 7
    %v1216 = vsub.s32 0, %v1215
    %v1217 = vrot.slane %v1185, %v1216
    %v1219 = vmul.f32 %v1211, %v1217
    %v1220 = vmul.f32 %v1212, %v1217
    %v1222 = vlaneseq
    %v1223 = vshrl.u32 %v1222, 7
    %v1224 = vsub.s32 0, %v1223
    %v1225 = vrot.slane %v1186, %v1224
    %v1227 = vadd.f32 %v1219, %v1225
    %v1228 = vadd.f32 %v1220, %v1225
    %v1229 = vld [vmem:[%s20] sm:$0xff]
    %v1230 = vld [vmem:[%s20 + $0x8] sm:$0xff]
    %v1231 = vld [vmem:[%s20 + $0x10] sm:$0xff]
    %v1232 = vld [vmem:[%s20 + $0x18] sm:$0xff]
    %v1233 = vld [vmem:[%s21] sm:$0x1]
    %v1235 = vlaneseq
    %v1236 = vshrl.u32 %v1235, 7
    %v1237 = vsub.s32 0, %v1236
    %v1238 = vrot.slane %v1233, %v1237
    %v1242 = vrot.slane %v1228, 7
    %vm1243 = vcmask 1041409
    %v1244 = vsel %vm1243, %v1242, %v1227
    %v1245 = vsel %vm236, %v1244, 0
    %1247 = vmatprep.subr.mxu0 0.0
    %1248 = vmatpush1.msra.mxu0 %v1229
    %1249 = vmatprep.subr.mxu0 0.0
    %1250 = vmatpush1.msra.mxu0 %v1230
    %1251 = vmatprep.subr.mxu0 0.0
    %1252 = vmatpush1.msra.mxu0 %v1231
    %1253 = vmatprep.subr.mxu0 0.0
    %1254 = vmatpush1.msra.mxu0 %v1232
    %1255 = vmatprep.subr.mxu0 0.0
    %1256 = vmatpush1.msra.mxu0 0.0
    %1257 = vmatprep.subr.mxu0 0.0
    %1258 = vmatpush1.msra.mxu0 0.0
    %1259 = vmatprep.subr.mxu0 0.0
    %1260 = vmatpush1.msra.mxu0 0.0
    %1261 = vmatprep.subr.mxu0 0.0
    %1262 = vmatpush1.msra.mxu0 0.0
    %1263 = vmatprep.subr.mxu0 0.0
    %1264 = vmatpush1.msra.mxu0 0.0
    %1265 = vmatprep.subr.mxu0 0.0
    %1266 = vmatpush1.msra.mxu0 0.0
    %1267 = vmatprep.subr.mxu0 0.0
    %1268 = vmatpush1.msra.mxu0 0.0
    %1269 = vmatprep.subr.mxu0 0.0
    %1270 = vmatpush1.msra.mxu0 0.0
    %1271 = vmatprep.subr.mxu0 0.0
    %1272 = vmatpush1.msra.mxu0 0.0
    %1273 = vmatprep.subr.mxu0 0.0
    %1274 = vmatpush1.msra.mxu0 0.0
    %1275 = vmatprep.subr.mxu0 0.0
    %1276 = vmatpush1.msra.mxu0 0.0
    %1277 = vmatprep.subr.mxu0 0.0
    %1278 = vmatpush1.msra.mxu0 0.0
    %1279 = vmatprep.subr.mxu0 0.0
    %1280 = vmatpush1.msra.mxu0 0.0
    %1281 = vmatprep.subr.mxu0 0.0
    %1282 = vmatpush1.msra.mxu0 0.0
    %1283 = vmatprep.subr.mxu0 0.0
    %1284 = vmatpush1.msra.mxu0 0.0
    %1285 = vmatprep.subr.mxu0 0.0
    %1286 = vmatpush1.msra.mxu0 0.0
    %1287 = vmatprep.subr.mxu0 0.0
    %1288 = vmatpush1.msra.mxu0 0.0
    %1289 = vmatprep.subr.mxu0 0.0
    %1290 = vmatpush1.msra.mxu0 0.0
    %1291 = vmatprep.subr.mxu0 0.0
    %1292 = vmatpush1.msra.mxu0 0.0
    %1293 = vmatprep.subr.mxu0 0.0
    %1294 = vmatpush1.msra.mxu0 0.0
    %1295 = vmatprep.subr.mxu0 0.0
    %1296 = vmatpush1.msra.mxu0 0.0
    %1297 = vmatprep.subr.mxu0 0.0
    %1298 = vmatpush1.msra.mxu0 0.0
    %1299 = vmatprep.subr.mxu0 0.0
    %1300 = vmatpush1.msra.mxu0 0.0
    %1301 = vmatprep.subr.mxu0 0.0
    %1302 = vmatpush1.msra.mxu0 0.0
    %1303 = vmatprep.subr.mxu0 0.0
    %1304 = vmatpush1.msra.mxu0 0.0
    %1305 = vmatprep.subr.mxu0 0.0
    %1306 = vmatpush1.msra.mxu0 0.0
    %1307 = vmatprep.subr.mxu0 0.0
    %1308 = vmatpush1.msra.mxu0 0.0
    %1309 = vmatprep.subr.mxu0 0.0
    %1310 = vmatpush1.msra.mxu0 0.0
    %1311 = vmatprep.mubr.f32.mxu0 0.0
    %1312 = vmatmul.mubr.f32.gmra.mrb[0].mxu0 %v1245
    %v1313 = vpop.f32.mrb[0].mxu0
    %v1314 = vadd.f32 %v1238, %v1313
    %v1315 = vpop.f32.mrb[0].mxu0
    %1316 = vdwg.mxu0
    %v1317 = vtanh.pop %v1314
    %v1318 = vld [vmem:[%s22] sm:$0xff]
    %v1319 = vld [vmem:[%s22 + $0x8] sm:$0xff]
    %v1320 = vld [vmem:[%s22 + $0x10] sm:$0xff]
    %v1321 = vld [vmem:[%s22 + $0x18] sm:$0xff]
    %v1322 = vld [vmem:[%s23] sm:$0x1]
    %v1324 = vlaneseq
    %v1325 = vshrl.u32 %v1324, 7
    %v1326 = vsub.s32 0, %v1325
    %v1327 = vrot.slane %v1322, %v1326
    %v1330 = vsel %vm236, %v1317, 0
    %1332 = vmatprep.subr.mxu0 0.0
    %1333 = vmatpush1.msra.mxu0 %v1318
    %1334 = vmatprep.subr.mxu0 0.0
    %1335 = vmatpush1.msra.mxu0 %v1319
    %1336 = vmatprep.subr.mxu0 0.0
    %1337 = vmatpush1.msra.mxu0 %v1320
    %1338 = vmatprep.subr.mxu0 0.0
    %1339 = vmatpush1.msra.mxu0 %v1321
    %1340 = vmatprep.subr.mxu0 0.0
    %1341 = vmatpush1.msra.mxu0 0.0
    %1342 = vmatprep.subr.mxu0 0.0
    %1343 = vmatpush1.msra.mxu0 0.0
    %1344 = vmatprep.subr.mxu0 0.0
    %1345 = vmatpush1.msra.mxu0 0.0
    %1346 = vmatprep.subr.mxu0 0.0
    %1347 = vmatpush1.msra.mxu0 0.0
    %1348 = vmatprep.subr.mxu0 0.0
    %1349 = vmatpush1.msra.mxu0 0.0
    %1350 = vmatprep.subr.mxu0 0.0
    %1351 = vmatpush1.msra.mxu0 0.0
    %1352 = vmatprep.subr.mxu0 0.0
    %1353 = vmatpush1.msra.mxu0 0.0
    %1354 = vmatprep.subr.mxu0 0.0
    %1355 = vmatpush1.msra.mxu0 0.0
    %1356 = vmatprep.subr.mxu0 0.0
    %1357 = vmatpush1.msra.mxu0 0.0
    %1358 = vmatprep.subr.mxu0 0.0
    %1359 = vmatpush1.msra.mxu0 0.0
    %1360 = vmatprep.subr.mxu0 0.0
    %1361 = vmatpush1.msra.mxu0 0.0
    %1362 = vmatprep.subr.mxu0 0.0
    %1363 = vmatpush1.msra.mxu0 0.0
    %1364 = vmatprep.subr.mxu0 0.0
    %1365 = vmatpush1.msra.mxu0 0.0
    %1366 = vmatprep.subr.mxu0 0.0
    %1367 = vmatpush1.msra.mxu0 0.0
    %1368 = vmatprep.subr.mxu0 0.0
    %1369 = vmatpush1.msra.mxu0 0.0
    %1370 = vmatprep.subr.mxu0 0.0
    %1371 = vmatpush1.msra.mxu0 0.0
    %1372 = vmatprep.subr.mxu0 0.0
    %1373 = vmatpush1.msra.mxu0 0.0
    %1374 = vmatprep.subr.mxu0 0.0
    %1375 = vmatpush1.msra.mxu0 0.0
    %1376 = vmatprep.subr.mxu0 0.0
    %1377 = vmatpush1.msra.mxu0 0.0
    %1378 = vmatprep.subr.mxu0 0.0
    %1379 = vmatpush1.msra.mxu0 0.0
    %1380 = vmatprep.subr.mxu0 0.0
    %1381 = vmatpush1.msra.mxu0 0.0
    %1382 = vmatprep.subr.mxu0 0.0
    %1383 = vmatpush1.msra.mxu0 0.0
    %1384 = vmatprep.subr.mxu0 0.0
    %1385 = vmatpush1.msra.mxu0 0.0
    %1386 = vmatprep.subr.mxu0 0.0
    %1387 = vmatpush1.msra.mxu0 0.0
    %1388 = vmatprep.subr.mxu0 0.0
    %1389 = vmatpush1.msra.mxu0 0.0
    %1390 = vmatprep.subr.mxu0 0.0
    %1391 = vmatpush1.msra.mxu0 0.0
    %1392 = vmatprep.subr.mxu0 0.0
    %1393 = vmatpush1.msra.mxu0 0.0
    %1394 = vmatprep.subr.mxu0 0.0
    %1395 = vmatpush1.msra.mxu0 0.0
    %1396 = vmatprep.mubr.f32.mxu0 0.0
    %1397 = vmatmul.mubr.f32.gmra.mrb[0].mxu0 %v1330
    %v1398 = vpop.f32.mrb[0].mxu0
    %v1399 = vadd.f32 %v1327, %v1398
    %v1400 = vpop.f32.mrb[0].mxu0
    %1401 = vdwg.mxu0
    %1402 = vst [vmem:[#allocation5] sm:$0x3] %v1399
    // Predicated region
    $region102: #{bert_classifier_forward.1} parent=1 // pred_check
      _
    $region103: #{bert_classifier_forward.1} parent=1 // pred_check_branch
      %1404 = sbr.rel (0) target = $region105
    $region104: #{bert_classifier_forward.1} parent=1 // pred_region
      %s1406 = ssub.s32 32, 32
      %1407 = vsyncadd [#allocation3], %s1406
      %s1409 = sshll.u32 [#allocation5], 4
      %s1410 = int_to_ptr.vmem [resolvable:$true] %s1409
      %1412 = dma.vmem_to_hbm [thread:$0]  %s1410, 32, %s24, [#allocation3]
    $region105: #{bert_classifier_forward.1} parent=1 // pred_fallthru
      _
    // Predicated region
    $region106: #{bert_classifier_forward.1} parent=1 // pred_check
      _
    $region107: #{bert_classifier_forward.1} parent=1 // pred_check_branch
      %1414 = sbr.rel (0) target = $region109
    $region108: #{bert_classifier_forward.1} parent=1 // pred_region
      %1415 = dma.done [#allocation3], 32
    $region109: #{bert_classifier_forward.1} parent=1 // pred_fallthru
      _
    %1416 = vsyncpa [#allocation3], 1
    %1417 = vsyncpa [#allocation4], 1

</llo_original>
